<compile_context>
chip_gen: v5e
topology: v5e:2x2
jax: 0.10.0
libtpu: 0.0.40
codegen_flags: <defaults>
</compile_context>

<pallas_src>
import numpy as np
import jax
import jax.numpy as jnp
from jax import lax
from jax.experimental import pallas as pl
from jax.experimental.pallas import tpu as pltpu

DILATIONS = (6, 12, 18, 24)      # dilation_series == padding_series
KSIZE = 3


def _round_up(x, m):
    return -(-x // m) * m


def _largest_divisor_le(n, cap):
    for t in range(min(cap, n), 0, -1):
        if n % t == 0:
            return t
    return n


# ---------------------------------------------------------------------------
# Kernel 1: Classifier_Module — sum of 4 dilated 3x3 convs (2048 -> K) + bias.
# ---------------------------------------------------------------------------
def _make_classifier_kernel(groups, K, S_pad):
    """groups: list of (row_lo, [(mask_row_idx, flat_offset), ...])."""

    def kernel(x_ref, w_ref, m_ref, b_ref, out_ref):
        # x_ref  : (1, Ck, S_pad)      bf16 feature chunk, S_pad lane-dense
        # w_ref  : (n_live*K, Ck)      bf16 tap-major / class-minor weights
        # m_ref  : (n_live, S_pad)     f32 0/1 validity masks per live tap
        # b_ref  : (1, K, 1)           f32 summed branch biases
        # out_ref: (1, K, S_pad)       f32 accumulator, resident across c axis
        c = pl.program_id(1)

        @pl.when(c == 0)
        def _():
            out_ref[...] = jnp.broadcast_to(b_ref[...], out_ref.shape)

        xv = x_ref[0]                                    # (Ck, S_pad) bf16
        for row_lo, taps in groups:
            nrows = len(taps) * K
            # MXU: per-(tap, class) responses at every spatial position.
            r = lax.dot_general(
                w_ref[row_lo:row_lo + nrows, :], xv,
                dimension_numbers=(((1,), (0,)), ((), ())),
                preferred_element_type=jnp.float32)      # (nrows, S_pad) f32
            # Shift-and-add epilogue in flattened-S space: XLU roll + mask.
            for j, (mrow, off) in enumerate(taps):
                rows = r[j * K:(j + 1) * K, :]           # (K, S_pad)
                if off == 0:
                    out_ref[0, :, :] += rows             # padded cols are zero
                else:
                    shifted = pltpu.roll(rows, shift=(-off) % S_pad, axis=1)
                    out_ref[0, :, :] += shifted * m_ref[mrow:mrow + 1, :]

    return kernel


def classifier_module(features, weights, biases, *, c_chunk=512,
                      max_matmul_rows=256):
    """Classifier_Module.forward.

    features: (N, C, Hf, Wf) NCHW backbone output (C = 2048).
    weights : list of 4 OIHW (K, C, 3, 3) conv weights.
    biases  : list of 4 (K,) conv biases.
    Returns (N, K, Hf, Wf) float32.
    """
    N, C, Hf, Wf = features.shape
    K = weights[0].shape[0]
    c_chunk = _largest_divisor_le(C, min(c_chunk, C))
    S = Hf * Wf
    S_pad = max(128, _round_up(S, 128))

    # Lane-dense, zero-padded bf16 input (f32 accumulation on the MXU).
    x = features.reshape(N, C, S).astype(jnp.bfloat16)
    if S_pad != S:
        x = jnp.pad(x, ((0, 0), (0, 0), (0, S_pad - S)))

    # Live-tap pruning: taps whose offset is fully outside the map contribute
    # exactly zero under the zero-padded PyTorch conv, so drop them here.
    ys, xs = np.divmod(np.arange(S), Wf)
    w_rows, mask_rows, offsets = [], [], []
    for di, d in enumerate(DILATIONS):
        for ky in range(KSIZE):
            for kx in range(KSIZE):
                dy, dx = d * (ky - 1), d * (kx - 1)
                if abs(dy) >= Hf or abs(dx) >= Wf:
                    continue
                offsets.append(dy * Wf + dx)
                w_rows.append(weights[di][:, :, ky, kx])          # (K, C)
                valid = ((ys + dy >= 0) & (ys + dy < Hf) &
                         (xs + dx >= 0) & (xs + dx < Wf))
                m = np.zeros((S_pad,), np.float32)
                m[:S] = valid
                mask_rows.append(m)
    n_live = len(offsets)
    w_all = jnp.concatenate(w_rows, axis=0).astype(jnp.bfloat16)  # (n_live*K, C)
    masks = jnp.asarray(np.stack(mask_rows))                      # (n_live, S_pad)
    b_sum = sum(biases).reshape(1, K, 1).astype(jnp.float32)

    # Group the live taps so the per-step f32 matmul intermediate stays small
    # (bounds VMEM / vreg pressure at production K=21, S=65*65).
    max_taps = max(1, max_matmul_rows // K)
    groups = []
    for start in range(0, n_live, max_taps):
        taps = [(t, offsets[t])
                for t in range(start, min(start + max_taps, n_live))]
        groups.append((start * K, taps))

    kernel = _make_classifier_kernel(groups, K, S_pad)

    vmem_est = (2 * (c_chunk * S_pad * 2 + n_live * K * c_chunk * 2
                     + n_live * S_pad * 4)
                + 2 * K * S_pad * 4
                + min(max_matmul_rows, n_live * K) * S_pad * 4)
    vmem_limit = int(min(48 * 2 ** 20, max(32 * 2 ** 20, 2 * vmem_est)))

    out = pl.pallas_call(
        kernel,
        out_shape=jax.ShapeDtypeStruct((N, K, S_pad), jnp.float32),
        grid_spec=pltpu.PrefetchScalarGridSpec(
            num_scalar_prefetch=0,
            grid=(N, C // c_chunk),
            in_specs=[
                pl.BlockSpec((1, c_chunk, S_pad), lambda n, c: (n, c, 0)),
                pl.BlockSpec((n_live * K, c_chunk), lambda n, c: (0, c)),
                pl.BlockSpec((n_live, S_pad), lambda n, c: (0, 0)),
                pl.BlockSpec((1, K, 1), lambda n, c: (0, 0, 0)),
            ],
            out_specs=pl.BlockSpec((1, K, S_pad), lambda n, c: (n, 0, 0)),
        ),
        compiler_params=pltpu.CompilerParams(
            dimension_semantics=("parallel", "arbitrary"),
            vmem_limit_bytes=vmem_limit),
    )(x, w_all, masks, b_sum)
    return out[:, :, :S].reshape(N, K, Hf, Wf)


# ---------------------------------------------------------------------------
# Kernel 2: F.interpolate(..., mode='bilinear', align_corners=True), NCHW.
# ---------------------------------------------------------------------------
def _interp_kernel(x_ref, ah_ref, awt_ref, out_ref, wide_ref):
    # x_ref   : (1, K, Hf*Wf) f32 classifier output (lane-dense, one DMA per n)
    # ah_ref  : (tH, Hf)      H-interp rows for this output tile
    # awt_ref : (Wf, W)       transposed W-interp matrix
    # out_ref : (1, K, tH, W) f32 output tile (W on lanes -> dense stores)
    # wide_ref: (K*Hf, W)     scratch: x @ A_w^T, computed once per n
    K = out_ref.shape[1]
    Wf, W = awt_ref.shape
    Hf = wide_ref.shape[0] // K

    @pl.when(pl.program_id(1) == 0)
    def _():
        xs = x_ref[0].reshape(K * Hf, Wf)
        wide_ref[...] = jnp.dot(xs, awt_ref[...],
                                preferred_element_type=jnp.float32)

    ah = ah_ref[...]
    for k in range(K):
        out_ref[0, k] = jnp.dot(
            ah, wide_ref[k * Hf:(k + 1) * Hf, :],
            preferred_element_type=jnp.float32).astype(out_ref.dtype)


def _interp_matrix(out_size, in_size):
    """Row-stochastic (out_size, in_size) bilinear matrix, align_corners=True."""
    if in_size == 1:
        return jnp.ones((out_size, 1), jnp.float32)
    if out_size == 1:
        src = jnp.zeros((1,), jnp.float32)
    else:
        src = jnp.arange(out_size, dtype=jnp.float32) * (
            (in_size - 1) / (out_size - 1))
    i0 = jnp.clip(jnp.floor(src).astype(jnp.int32), 0, in_size - 2)
    w1 = src - i0.astype(jnp.float32)
    w0 = 1.0 - w1
    rows = jnp.arange(out_size)
    A = jnp.zeros((out_size, in_size), jnp.float32)
    A = A.at[rows, i0].add(w0)
    A = A.at[rows, i0 + 1].add(w1)
    return A


def bilinear_upsample_align_corners(x, out_hw, *, h_tile=None, out_dtype=None):
    """x: (N, K, Hf, Wf) -> (N, K, H, W), bilinear, align_corners=True."""
    N, K, Hf, Wf = x.shape
    H, W = out_hw
    out_dtype = out_dtype or x.dtype
    if h_tile is None:
        if H % 128 == 0:
            h_tile = 128
        else:
            h_tile = H
            for t in range(8, min(H, 128) + 1, 8):   # largest 8-mult divisor
                if H % t == 0:
                    h_tile = t
    assert H % h_tile == 0

    ah = _interp_matrix(H, Hf)                # (H, Hf)
    awt = _interp_matrix(W, Wf).T             # (Wf, W)
    x_flat = x.reshape(N, K, Hf * Wf).astype(jnp.float32)

    vmem_est = (2 * (K * Hf * Wf * 4 + h_tile * Hf * 4 + Wf * W * 4)
                + 2 * K * h_tile * W * 4 + K * Hf * W * 4)
    vmem_limit = int(min(48 * 2 ** 20, max(32 * 2 ** 20, 2 * vmem_est)))

    return pl.pallas_call(
        _interp_kernel,
        out_shape=jax.ShapeDtypeStruct((N, K, H, W), out_dtype),
        grid_spec=pltpu.PrefetchScalarGridSpec(
            num_scalar_prefetch=0,
            grid=(N, H // h_tile),
            in_specs=[
                pl.BlockSpec((1, K, Hf * Wf), lambda n, h: (n, 0, 0)),
                pl.BlockSpec((h_tile, Hf), lambda n, h: (h, 0)),
                pl.BlockSpec((Wf, W), lambda n, h: (0, 0)),
            ],
            out_specs=pl.BlockSpec((1, K, h_tile, W), lambda n, h: (n, 0, h, 0)),
            scratch_shapes=[pltpu.VMEM((K * Hf, W), jnp.float32)],
        ),
        compiler_params=pltpu.CompilerParams(
            dimension_semantics=("parallel", "arbitrary"),
            vmem_limit_bytes=vmem_limit),
    )(x_flat, ah, awt)


def deeplabv2_head(features, out_hw, weights, biases):
    """DeepLabV2.forward tail: classifier(bx) -> bilinear upsample to input size."""
    cls = classifier_module(features, weights, biases)
    return bilinear_upsample_align_corners(cls, out_hw)


# ---------------------------------------------------------------------------
if __name__ == "__main__":
    key = jax.random.PRNGKey(0)
    N, C, Hf, Wf = 2, 2048, 16, 16           # backbone feature map (output_stride=16)
    num_classes = 1
    H_img, W_img = Hf * 16, Wf * 16          # original input spatial size

    keys = jax.random.split(key, 1 + 2 * len(DILATIONS))
    feats = jax.random.normal(keys[0], (N, C, Hf, Wf), jnp.float32)

    weights, biases = [], []
    bound = 1.0 / np.sqrt(C * KSIZE * KSIZE)
    for i in range(len(DILATIONS)):
        # matches Classifier_Module init: weight ~ N(0, 0.01), bias = Conv2d default
        weights.append(0.01 * jax.random.normal(
            keys[1 + 2 * i], (num_classes, C, KSIZE, KSIZE), jnp.float32))
        biases.append(jax.random.uniform(
            keys[2 + 2 * i], (num_classes,), jnp.float32, -bound, bound))

    # Kernels round features / weights to bf16 (with f32 accumulation); round
    # the reference inputs identically so the comparison is like-for-like.
    feats_r = feats.astype(jnp.bfloat16).astype(jnp.float32)
    weights_r = [w.astype(jnp.bfloat16).astype(jnp.float32) for w in weights]

    cls = classifier_module(feats_r, weights_r, biases)
    out = deeplabv2_head(feats_r, (H_img, W_img), weights_r, biases)
    out = jax.block_until_ready(out)
    assert out.shape == (N, num_classes, H_img, W_img)

    # --- reference check (plain JAX / XLA, NCHW) --------------------------
    ref_cls = jnp.zeros((N, num_classes, Hf, Wf), jnp.float32)
    for w, b, d in zip(weights_r, biases, DILATIONS):
        ref_cls = ref_cls + lax.conv_general_dilated(
            feats_r, w, window_strides=(1, 1),
            padding=((d, d), (d, d)), rhs_dilation=(d, d),
            dimension_numbers=('NCHW', 'OIHW', 'NCHW'),
            precision=lax.Precision.HIGHEST) + b.reshape(1, num_classes, 1, 1)
    ah_ref = _interp_matrix(H_img, Hf)
    awt_ref = _interp_matrix(W_img, Wf).T
    ref_out = jnp.einsum('hf,nkfw,wv->nkhv', ah_ref, ref_cls, awt_ref,
                         precision=lax.Precision.HIGHEST)

    np.testing.assert_allclose(np.asarray(cls), np.asarray(ref_cls),
                               rtol=2e-3, atol=2e-3)
    np.testing.assert_allclose(np.asarray(out), np.asarray(ref_out),
                               rtol=2e-3, atol=2e-3)

    print("KERNEL_OK")
</pallas_src>

<mosaic_0001>
module attributes {stable_mosaic.version = 11 : i64} {
  func.func @kernel(%arg0: i32, %arg1: i32, %arg2: memref<1x512x256xbf16, #tpu.memory_space<vmem>>, %arg3: memref<20x512xbf16, #tpu.memory_space<vmem>>, %arg4: memref<20x256xf32, #tpu.memory_space<vmem>>, %arg5: memref<1x1x1xf32, #tpu.memory_space<vmem>>, %arg6: memref<1x1x256xf32, #tpu.memory_space<vmem>>) attributes {dimension_semantics = [#tpu.dimension_semantics<parallel>, #tpu.dimension_semantics<arbitrary>], iteration_bounds = array<i64: 2, 4>, scalar_prefetch = 0 : i64, scratch_operands = 0 : i64, tpu.core_type = #tpu.core_type<tc>, window_params = [{transform_indices = @transform_0, window_bounds = array<i64: 1, 512, 256>}, {transform_indices = @transform_1, window_bounds = array<i64: 20, 512>}, {pipeline_mode = #tpu.pipeline_mode<synchronous>, transform_indices = @transform_2, window_bounds = array<i64: 20, 256>}, {pipeline_mode = #tpu.pipeline_mode<synchronous>, transform_indices = @transform_3, window_bounds = array<i64: 1, 1, 1>}, {transform_indices = @transform_4, window_bounds = array<i64: 1, 1, 256>}]} {
    %c0_i32 = arith.constant 0 : i32
    %0 = arith.cmpi eq, %arg1, %c0_i32 : i32
    %1 = arith.extui %0 : i1 to i32
    %c0_i32_0 = arith.constant 0 : i32
    %2 = arith.cmpi ne, %1, %c0_i32_0 : i32
    scf.if %2 {
      %c0_142 = arith.constant 0 : index
      %c0_143 = arith.constant 0 : index
      %c0_144 = arith.constant 0 : index
      %195 = vector.load %arg5[%c0_142, %c0_143, %c0_144] : memref<1x1x1xf32, #tpu.memory_space<vmem>>, vector<1x1x1xf32>
      %196 = vector.shape_cast %195 : vector<1x1x1xf32> to vector<1x1x1xf32>
      %197 = vector.broadcast %196 : vector<1x1x1xf32> to vector<1x1x256xf32>
      %c0_145 = arith.constant 0 : index
      %c0_146 = arith.constant 0 : index
      %c0_147 = arith.constant 0 : index
      %198 = vector.load %arg6[%c0_145, %c0_146, %c0_147] : memref<1x1x256xf32, #tpu.memory_space<vmem>>, vector<1x1x256xf32>
      tpu.vector_store %arg6[%c0_145, %c0_146, %c0_147], %197 {strides = array<i32>} : memref<1x1x256xf32, #tpu.memory_space<vmem>>, vector<1x1x256xf32>,
    } else {
    }
    %c0 = arith.constant 0 : index
    %c0_1 = arith.constant 0 : index
    %c0_2 = arith.constant 0 : index
    %3 = vector.load %arg2[%c0, %c0_1, %c0_2] : memref<1x512x256xbf16, #tpu.memory_space<vmem>>, vector<1x512x256xbf16>
    %4 = vector.shape_cast %3 : vector<1x512x256xbf16> to vector<512x256xbf16>
    %c0_3 = arith.constant 0 : index
    %c0_4 = arith.constant 0 : index
    %5 = vector.load %arg3[%c0_3, %c0_4] : memref<20x512xbf16, #tpu.memory_space<vmem>>, vector<20x512xbf16>
    %cst = arith.constant dense<0.000000e+00> : vector<20x256xf32>
    %6 = tpu.matmul %5, %4, %cst {dimension_numbers = #tpu.dot_dimension_numbers<[1], [0], [0], [1], [0, 0, 1, 1], [], []>} : vector<20x512xbf16>, vector<512x256xbf16>, vector<20x256xf32> -> vector<20x256xf32>
    %7 = vector.extract_strided_slice %6 {offsets = [0, 0], sizes = [1, 256], strides = [1, 1]} : vector<20x256xf32> to vector<1x256xf32>
    %c102_i32 = arith.constant 102 : i32
    %8 = tpu.dynamic_rotate %7 by %c102_i32 dim 1 : vector<1x256xf32>, i32 -> vector<1x256xf32>
    %c0_5 = arith.constant 0 : index
    %c0_6 = arith.constant 0 : index
    %c0_7 = arith.constant 0 : index
    %9 = vector.load %arg6[%c0_5, %c0_6, %c0_7] : memref<1x1x256xf32, #tpu.memory_space<vmem>>, vector<1x1x256xf32>
    %10 = vector.shape_cast %9 : vector<1x1x256xf32> to vector<1x256xf32>
    %c0_8 = arith.constant 0 : index
    %c0_9 = arith.constant 0 : index
    %11 = vector.load %arg4[%c0_8, %c0_9] : memref<20x256xf32, #tpu.memory_space<vmem>>, vector<1x256xf32>
    %12 = arith.mulf %8, %11 : vector<1x256xf32>
    %13 = arith.addf %10, %12 : vector<1x256xf32>
    %c0_10 = arith.constant 0 : index
    %c0_11 = arith.constant 0 : index
    %c0_12 = arith.constant 0 : index
    %14 = vector.load %arg6[%c0_10, %c0_11, %c0_12] : memref<1x1x256xf32, #tpu.memory_space<vmem>>, vector<1x1x256xf32>
    %15 = vector.shape_cast %14 : vector<1x1x256xf32> to vector<1x256xf32>
    %16 = vector.shape_cast %13 : vector<1x256xf32> to vector<1x1x256xf32>
    tpu.vector_store %arg6[%c0_10, %c0_11, %c0_12], %16 {strides = array<i32>} : memref<1x1x256xf32, #tpu.memory_space<vmem>>, vector<1x1x256xf32>,
    %17 = vector.extract_strided_slice %6 {offsets = [1, 0], sizes = [1, 256], strides = [1, 1]} : vector<20x256xf32> to vector<1x256xf32>
    %c96_i32 = arith.constant 96 : i32
    %18 = tpu.dynamic_rotate %17 by %c96_i32 dim 1 : vector<1x256xf32>, i32 -> vector<1x256xf32>
    %c0_13 = arith.constant 0 : index
    %c0_14 = arith.constant 0 : index
    %c0_15 = arith.constant 0 : index
    %19 = vector.load %arg6[%c0_13, %c0_14, %c0_15] : memref<1x1x256xf32, #tpu.memory_space<vmem>>, vector<1x1x256xf32>
    %20 = vector.shape_cast %19 : vector<1x1x256xf32> to vector<1x256xf32>
    %c1 = arith.constant 1 : index
    %c0_16 = arith.constant 0 : index
    %21 = vector.load %arg4[%c1, %c0_16] : memref<20x256xf32, #tpu.memory_space<vmem>>, vector<1x256xf32>
    %22 = arith.mulf %18, %21 : vector<1x256xf32>
    %23 = arith.addf %20, %22 : vector<1x256xf32>
    %c0_17 = arith.constant 0 : index
    %c0_18 = arith.constant 0 : index
    %c0_19 = arith.constant 0 : index
    %24 = vector.load %arg6[%c0_17, %c0_18, %c0_19] : memref<1x1x256xf32, #tpu.memory_space<vmem>>, vector<1x1x256xf32>
    %25 = vector.shape_cast %24 : vector<1x1x256xf32> to vector<1x256xf32>
    %26 = vector.shape_cast %23 : vector<1x256xf32> to vector<1x1x256xf32>
    tpu.vector_store %arg6[%c0_17, %c0_18, %c0_19], %26 {strides = array<i32>} : memref<1x1x256xf32, #tpu.memory_space<vmem>>, vector<1x1x256xf32>,
    %27 = vector.extract_strided_slice %6 {offsets = [2, 0], sizes = [1, 256], strides = [1, 1]} : vector<20x256xf32> to vector<1x256xf32>
    %c90_i32 = arith.constant 90 : i32
    %28 = tpu.dynamic_rotate %27 by %c90_i32 dim 1 : vector<1x256xf32>, i32 -> vector<1x256xf32>
    %c0_20 = arith.constant 0 : index
    %c0_21 = arith.constant 0 : index
    %c0_22 = arith.constant 0 : index
    %29 = vector.load %arg6[%c0_20, %c0_21, %c0_22] : memref<1x1x256xf32, #tpu.memory_space<vmem>>, vector<1x1x256xf32>
    %30 = vector.shape_cast %29 : vector<1x1x256xf32> to vector<1x256xf32>
    %c2 = arith.constant 2 : index
    %c0_23 = arith.constant 0 : index
    %31 = vector.load %arg4[%c2, %c0_23] : memref<20x256xf32, #tpu.memory_space<vmem>>, vector<1x256xf32>
    %32 = arith.mulf %28, %31 : vector<1x256xf32>
    %33 = arith.addf %30, %32 : vector<1x256xf32>
    %c0_24 = arith.constant 0 : index
    %c0_25 = arith.constant 0 : index
    %c0_26 = arith.constant 0 : index
    %34 = vector.load %arg6[%c0_24, %c0_25, %c0_26] : memref<1x1x256xf32, #tpu.memory_space<vmem>>, vector<1x1x256xf32>
    %35 = vector.shape_cast %34 : vector<1x1x256xf32> to vector<1x256xf32>
    %36 = vector.shape_cast %33 : vector<1x256xf32> to vector<1x1x256xf32>
    tpu.vector_store %arg6[%c0_24, %c0_25, %c0_26], %36 {strides = array<i32>} : memref<1x1x256xf32, #tpu.memory_space<vmem>>, vector<1x1x256xf32>,
    %37 = vector.extract_strided_slice %6 {offsets = [3, 0], sizes = [1, 256], strides = [1, 1]} : vector<20x256xf32> to vector<1x256xf32>
    %c6_i32 = arith.constant 6 : i32
    %38 = tpu.dynamic_rotate %37 by %c6_i32 dim 1 : vector<1x256xf32>, i32 -> vector<1x256xf32>
    %c0_27 = arith.constant 0 : index
    %c0_28 = arith.constant 0 : index
    %c0_29 = arith.constant 0 : index
    %39 = vector.load %arg6[%c0_27, %c0_28, %c0_29] : memref<1x1x256xf32, #tpu.memory_space<vmem>>, vector<1x1x256xf32>
    %40 = vector.shape_cast %39 : vector<1x1x256xf32> to vector<1x256xf32>
    %c3 = arith.constant 3 : index
    %c0_30 = arith.constant 0 : index
    %41 = vector.load %arg4[%c3, %c0_30] : memref<20x256xf32, #tpu.memory_space<vmem>>, vector<1x256xf32>
    %42 = arith.mulf %38, %41 : vector<1x256xf32>
    %43 = arith.addf %40, %42 : vector<1x256xf32>
    %c0_31 = arith.constant 0 : index
    %c0_32 = arith.constant 0 : index
    %c0_33 = arith.constant 0 : index
    %44 = vector.load %arg6[%c0_31, %c0_32, %c0_33] : memref<1x1x256xf32, #tpu.memory_space<vmem>>, vector<1x1x256xf32>
    %45 = vector.shape_cast %44 : vector<1x1x256xf32> to vector<1x256xf32>
    %46 = vector.shape_cast %43 : vector<1x256xf32> to vector<1x1x256xf32>
    tpu.vector_store %arg6[%c0_31, %c0_32, %c0_33], %46 {strides = array<i32>} : memref<1x1x256xf32, #tpu.memory_space<vmem>>, vector<1x1x256xf32>,
    %47 = vector.extract_strided_slice %6 {offsets = [4, 0], sizes = [1, 256], strides = [1, 1]} : vector<20x256xf32> to vector<1x256xf32>
    %c0_34 = arith.constant 0 : index
    %c0_35 = arith.constant 0 : index
    %c0_36 = arith.constant 0 : index
    %48 = vector.load %arg6[%c0_34, %c0_35, %c0_36] : memref<1x1x256xf32, #tpu.memory_space<vmem>>, vector<1x1x256xf32>
    %49 = vector.shape_cast %48 : vector<1x1x256xf32> to vector<1x256xf32>
    %50 = arith.addf %49, %47 : vector<1x256xf32>
    %c0_37 = arith.constant 0 : index
    %c0_38 = arith.constant 0 : index
    %c0_39 = arith.constant 0 : index
    %51 = vector.load %arg6[%c0_37, %c0_38, %c0_39] : memref<1x1x256xf32, #tpu.memory_space<vmem>>, vector<1x1x256xf32>
    %52 = vector.shape_cast %51 : vector<1x1x256xf32> to vector<1x256xf32>
    %53 = vector.shape_cast %50 : vector<1x256xf32> to vector<1x1x256xf32>
    tpu.vector_store %arg6[%c0_37, %c0_38, %c0_39], %53 {strides = array<i32>} : memref<1x1x256xf32, #tpu.memory_space<vmem>>, vector<1x1x256xf32>,
    %54 = vector.extract_strided_slice %6 {offsets = [5, 0], sizes = [1, 256], strides = [1, 1]} : vector<20x256xf32> to vector<1x256xf32>
    %c250_i32 = arith.constant 250 : i32
    %55 = tpu.dynamic_rotate %54 by %c250_i32 dim 1 : vector<1x256xf32>, i32 -> vector<1x256xf32>
    %c0_40 = arith.constant 0 : index
    %c0_41 = arith.constant 0 : index
    %c0_42 = arith.constant 0 : index
    %56 = vector.load %arg6[%c0_40, %c0_41, %c0_42] : memref<1x1x256xf32, #tpu.memory_space<vmem>>, vector<1x1x256xf32>
    %57 = vector.shape_cast %56 : vector<1x1x256xf32> to vector<1x256xf32>
    %c5 = arith.constant 5 : index
    %c0_43 = arith.constant 0 : index
    %58 = vector.load %arg4[%c5, %c0_43] : memref<20x256xf32, #tpu.memory_space<vmem>>, vector<1x256xf32>
    %59 = arith.mulf %55, %58 : vector<1x256xf32>
    %60 = arith.addf %57, %59 : vector<1x256xf32>
    %c0_44 = arith.constant 0 : index
    %c0_45 = arith.constant 0 : index
    %c0_46 = arith.constant 0 : index
    %61 = vector.load %arg6[%c0_44, %c0_45, %c0_46] : memref<1x1x256xf32, #tpu.memory_space<vmem>>, vector<1x1x256xf32>
    %62 = vector.shape_cast %61 : vector<1x1x256xf32> to vector<1x256xf32>
    %63 = vector.shape_cast %60 : vector<1x256xf32> to vector<1x1x256xf32>
    tpu.vector_store %arg6[%c0_44, %c0_45, %c0_46], %63 {strides = array<i32>} : memref<1x1x256xf32, #tpu.memory_space<vmem>>, vector<1x1x256xf32>,
    %64 = vector.extract_strided_slice %6 {offsets = [6, 0], sizes = [1, 256], strides = [1, 1]} : vector<20x256xf32> to vector<1x256xf32>
    %c166_i32 = arith.constant 166 : i32
    %65 = tpu.dynamic_rotate %64 by %c166_i32 dim 1 : vector<1x256xf32>, i32 -> vector<1x256xf32>
    %c0_47 = arith.constant 0 : index
    %c0_48 = arith.constant 0 : index
    %c0_49 = arith.constant 0 : index
    %66 = vector.load %arg6[%c0_47, %c0_48, %c0_49] : memref<1x1x256xf32, #tpu.memory_space<vmem>>, vector<1x1x256xf32>
    %67 = vector.shape_cast %66 : vector<1x1x256xf32> to vector<1x256xf32>
    %c6 = arith.constant 6 : index
    %c0_50 = arith.constant 0 : index
    %68 = vector.load %arg4[%c6, %c0_50] : memref<20x256xf32, #tpu.memory_space<vmem>>, vector<1x256xf32>
    %69 = arith.mulf %65, %68 : vector<1x256xf32>
    %70 = arith.addf %67, %69 : vector<1x256xf32>
    %c0_51 = arith.constant 0 : index
    %c0_52 = arith.constant 0 : index
    %c0_53 = arith.constant 0 : index
    %71 = vector.load %arg6[%c0_51, %c0_52, %c0_53] : memref<1x1x256xf32, #tpu.memory_space<vmem>>, vector<1x1x256xf32>
    %72 = vector.shape_cast %71 : vector<1x1x256xf32> to vector<1x256xf32>
    %73 = vector.shape_cast %70 : vector<1x256xf32> to vector<1x1x256xf32>
    tpu.vector_store %arg6[%c0_51, %c0_52, %c0_53], %73 {strides = array<i32>} : memref<1x1x256xf32, #tpu.memory_space<vmem>>, vector<1x1x256xf32>,
    %74 = vector.extract_strided_slice %6 {offsets = [7, 0], sizes = [1, 256], strides = [1, 1]} : vector<20x256xf32> to vector<1x256xf32>
    %c160_i32 = arith.constant 160 : i32
    %75 = tpu.dynamic_rotate %74 by %c160_i32 dim 1 : vector<1x256xf32>, i32 -> vector<1x256xf32>
    %c0_54 = arith.constant 0 : index
    %c0_55 = arith.constant 0 : index
    %c0_56 = arith.constant 0 : index
    %76 = vector.load %arg6[%c0_54, %c0_55, %c0_56] : memref<1x1x256xf32, #tpu.memory_space<vmem>>, vector<1x1x256xf32>
    %77 = vector.shape_cast %76 : vector<1x1x256xf32> to vector<1x256xf32>
    %c7 = arith.constant 7 : index
    %c0_57 = arith.constant 0 : index
    %78 = vector.load %arg4[%c7, %c0_57] : memref<20x256xf32, #tpu.memory_space<vmem>>, vector<1x256xf32>
    %79 = arith.mulf %75, %78 : vector<1x256xf32>
    %80 = arith.addf %77, %79 : vector<1x256xf32>
    %c0_58 = arith.constant 0 : index
    %c0_59 = arith.constant 0 : index
    %c0_60 = arith.constant 0 : index
    %81 = vector.load %arg6[%c0_58, %c0_59, %c0_60] : memref<1x1x256xf32, #tpu.memory_space<vmem>>, vector<1x1x256xf32>
    %82 = vector.shape_cast %81 : vector<1x1x256xf32> to vector<1x256xf32>
    %83 = vector.shape_cast %80 : vector<1x256xf32> to vector<1x1x256xf32>
    tpu.vector_store %arg6[%c0_58, %c0_59, %c0_60], %83 {strides = array<i32>} : memref<1x1x256xf32, #tpu.memory_space<vmem>>, vector<1x1x256xf32>,
    %84 = vector.extract_strided_slice %6 {offsets = [8, 0], sizes = [1, 256], strides = [1, 1]} : vector<20x256xf32> to vector<1x256xf32>
    %c154_i32 = arith.constant 154 : i32
    %85 = tpu.dynamic_rotate %84 by %c154_i32 dim 1 : vector<1x256xf32>, i32 -> vector<1x256xf32>
    %c0_61 = arith.constant 0 : index
    %c0_62 = arith.constant 0 : index
    %c0_63 = arith.constant 0 : index
    %86 = vector.load %arg6[%c0_61, %c0_62, %c0_63] : memref<1x1x256xf32, #tpu.memory_space<vmem>>, vector<1x1x256xf32>
    %87 = vector.shape_cast %86 : vector<1x1x256xf32> to vector<1x256xf32>
    %c8 = arith.constant 8 : index
    %c0_64 = arith.constant 0 : index
    %88 = vector.load %arg4[%c8, %c0_64] : memref<20x256xf32, #tpu.memory_space<vmem>>, vector<1x256xf32>
    %89 = arith.mulf %85, %88 : vector<1x256xf32>
    %90 = arith.addf %87, %89 : vector<1x256xf32>
    %c0_65 = arith.constant 0 : index
    %c0_66 = arith.constant 0 : index
    %c0_67 = arith.constant 0 : index
    %91 = vector.load %arg6[%c0_65, %c0_66, %c0_67] : memref<1x1x256xf32, #tpu.memory_space<vmem>>, vector<1x1x256xf32>
    %92 = vector.shape_cast %91 : vector<1x1x256xf32> to vector<1x256xf32>
    %93 = vector.shape_cast %90 : vector<1x256xf32> to vector<1x1x256xf32>
    tpu.vector_store %arg6[%c0_65, %c0_66, %c0_67], %93 {strides = array<i32>} : memref<1x1x256xf32, #tpu.memory_space<vmem>>, vector<1x1x256xf32>,
    %94 = vector.extract_strided_slice %6 {offsets = [9, 0], sizes = [1, 256], strides = [1, 1]} : vector<20x256xf32> to vector<1x256xf32>
    %c204_i32 = arith.constant 204 : i32
    %95 = tpu.dynamic_rotate %94 by %c204_i32 dim 1 : vector<1x256xf32>, i32 -> vector<1x256xf32>
    %c0_68 = arith.constant 0 : index
    %c0_69 = arith.constant 0 : index
    %c0_70 = arith.constant 0 : index
    %96 = vector.load %arg6[%c0_68, %c0_69, %c0_70] : memref<1x1x256xf32, #tpu.memory_space<vmem>>, vector<1x1x256xf32>
    %97 = vector.shape_cast %96 : vector<1x1x256xf32> to vector<1x256xf32>
    %c9 = arith.constant 9 : index
    %c0_71 = arith.constant 0 : index
    %98 = vector.load %arg4[%c9, %c0_71] : memref<20x256xf32, #tpu.memory_space<vmem>>, vector<1x256xf32>
    %99 = arith.mulf %95, %98 : vector<1x256xf32>
    %100 = arith.addf %97, %99 : vector<1x256xf32>
    %c0_72 = arith.constant 0 : index
    %c0_73 = arith.constant 0 : index
    %c0_74 = arith.constant 0 : index
    %101 = vector.load %arg6[%c0_72, %c0_73, %c0_74] : memref<1x1x256xf32, #tpu.memory_space<vmem>>, vector<1x1x256xf32>
    %102 = vector.shape_cast %101 : vector<1x1x256xf32> to vector<1x256xf32>
    %103 = vector.shape_cast %100 : vector<1x256xf32> to vector<1x1x256xf32>
    tpu.vector_store %arg6[%c0_72, %c0_73, %c0_74], %103 {strides = array<i32>} : memref<1x1x256xf32, #tpu.memory_space<vmem>>, vector<1x1x256xf32>,
    %104 = vector.extract_strided_slice %6 {offsets = [10, 0], sizes = [1, 256], strides = [1, 1]} : vector<20x256xf32> to vector<1x256xf32>
    %c192_i32 = arith.constant 192 : i32
    %105 = tpu.dynamic_rotate %104 by %c192_i32 dim 1 : vector<1x256xf32>, i32 -> vector<1x256xf32>
    %c0_75 = arith.constant 0 : index
    %c0_76 = arith.constant 0 : index
    %c0_77 = arith.constant 0 : index
    %106 = vector.load %arg6[%c0_75, %c0_76, %c0_77] : memref<1x1x256xf32, #tpu.memory_space<vmem>>, vector<1x1x256xf32>
    %107 = vector.shape_cast %106 : vector<1x1x256xf32> to vector<1x256xf32>
    %c10 = arith.constant 10 : index
    %c0_78 = arith.constant 0 : index
    %108 = vector.load %arg4[%c10, %c0_78] : memref<20x256xf32, #tpu.memory_space<vmem>>, vector<1x256xf32>
    %109 = arith.mulf %105, %108 : vector<1x256xf32>
    %110 = arith.addf %107, %109 : vector<1x256xf32>
    %c0_79 = arith.constant 0 : index
    %c0_80 = arith.constant 0 : index
    %c0_81 = arith.constant 0 : index
    %111 = vector.load %arg6[%c0_79, %c0_80, %c0_81] : memref<1x1x256xf32, #tpu.memory_space<vmem>>, vector<1x1x256xf32>
    %112 = vector.shape_cast %111 : vector<1x1x256xf32> to vector<1x256xf32>
    %113 = vector.shape_cast %110 : vector<1x256xf32> to vector<1x1x256xf32>
    tpu.vector_store %arg6[%c0_79, %c0_80, %c0_81], %113 {strides = array<i32>} : memref<1x1x256xf32, #tpu.memory_space<vmem>>, vector<1x1x256xf32>,
    %114 = vector.extract_strided_slice %6 {offsets = [11, 0], sizes = [1, 256], strides = [1, 1]} : vector<20x256xf32> to vector<1x256xf32>
    %c180_i32 = arith.constant 180 : i32
    %115 = tpu.dynamic_rotate %114 by %c180_i32 dim 1 : vector<1x256xf32>, i32 -> vector<1x256xf32>
    %c0_82 = arith.constant 0 : index
    %c0_83 = arith.constant 0 : index
    %c0_84 = arith.constant 0 : index
    %116 = vector.load %arg6[%c0_82, %c0_83, %c0_84] : memref<1x1x256xf32, #tpu.memory_space<vmem>>, vector<1x1x256xf32>
    %117 = vector.shape_cast %116 : vector<1x1x256xf32> to vector<1x256xf32>
    %c11 = arith.constant 11 : index
    %c0_85 = arith.constant 0 : index
    %118 = vector.load %arg4[%c11, %c0_85] : memref<20x256xf32, #tpu.memory_space<vmem>>, vector<1x256xf32>
    %119 = arith.mulf %115, %118 : vector<1x256xf32>
    %120 = arith.addf %117, %119 : vector<1x256xf32>
    %c0_86 = arith.constant 0 : index
    %c0_87 = arith.constant 0 : index
    %c0_88 = arith.constant 0 : index
    %121 = vector.load %arg6[%c0_86, %c0_87, %c0_88] : memref<1x1x256xf32, #tpu.memory_space<vmem>>, vector<1x1x256xf32>
    %122 = vector.shape_cast %121 : vector<1x1x256xf32> to vector<1x256xf32>
    %123 = vector.shape_cast %120 : vector<1x256xf32> to vector<1x1x256xf32>
    tpu.vector_store %arg6[%c0_86, %c0_87, %c0_88], %123 {strides = array<i32>} : memref<1x1x256xf32, #tpu.memory_space<vmem>>, vector<1x1x256xf32>,
    %124 = vector.extract_strided_slice %6 {offsets = [12, 0], sizes = [1, 256], strides = [1, 1]} : vector<20x256xf32> to vector<1x256xf32>
    %c12_i32 = arith.constant 12 : i32
    %125 = tpu.dynamic_rotate %124 by %c12_i32 dim 1 : vector<1x256xf32>, i32 -> vector<1x256xf32>
    %c0_89 = arith.constant 0 : index
    %c0_90 = arith.constant 0 : index
    %c0_91 = arith.constant 0 : index
    %126 = vector.load %arg6[%c0_89, %c0_90, %c0_91] : memref<1x1x256xf32, #tpu.memory_space<vmem>>, vector<1x1x256xf32>
    %127 = vector.shape_cast %126 : vector<1x1x256xf32> to vector<1x256xf32>
    %c12 = arith.constant 12 : index
    %c0_92 = arith.constant 0 : index
    %128 = vector.load %arg4[%c12, %c0_92] : memref<20x256xf32, #tpu.memory_space<vmem>>, vector<1x256xf32>
    %129 = arith.mulf %125, %128 : vector<1x256xf32>
    %130 = arith.addf %127, %129 : vector<1x256xf32>
    %c0_93 = arith.constant 0 : index
    %c0_94 = arith.constant 0 : index
    %c0_95 = arith.constant 0 : index
    %131 = vector.load %arg6[%c0_93, %c0_94, %c0_95] : memref<1x1x256xf32, #tpu.memory_space<vmem>>, vector<1x1x256xf32>
    %132 = vector.shape_cast %131 : vector<1x1x256xf32> to vector<1x256xf32>
    %133 = vector.shape_cast %130 : vector<1x256xf32> to vector<1x1x256xf32>
    tpu.vector_store %arg6[%c0_93, %c0_94, %c0_95], %133 {strides = array<i32>} : memref<1x1x256xf32, #tpu.memory_space<vmem>>, vector<1x1x256xf32>,
    %134 = vector.extract_strided_slice %6 {offsets = [13, 0], sizes = [1, 256], strides = [1, 1]} : vector<20x256xf32> to vector<1x256xf32>
    %c0_96 = arith.constant 0 : index
    %c0_97 = arith.constant 0 : index
    %c0_98 = arith.constant 0 : index
    %135 = vector.load %arg6[%c0_96, %c0_97, %c0_98] : memref<1x1x256xf32, #tpu.memory_space<vmem>>, vector<1x1x256xf32>
    %136 = vector.shape_cast %135 : vector<1x1x256xf32> to vector<1x256xf32>
    %137 = arith.addf %136, %134 : vector<1x256xf32>
    %c0_99 = arith.constant 0 : index
    %c0_100 = arith.constant 0 : index
    %c0_101 = arith.constant 0 : index
    %138 = vector.load %arg6[%c0_99, %c0_100, %c0_101] : memref<1x1x256xf32, #tpu.memory_space<vmem>>, vector<1x1x256xf32>
    %139 = vector.shape_cast %138 : vector<1x1x256xf32> to vector<1x256xf32>
    %140 = vector.shape_cast %137 : vector<1x256xf32> to vector<1x1x256xf32>
    tpu.vector_store %arg6[%c0_99, %c0_100, %c0_101], %140 {strides = array<i32>} : memref<1x1x256xf32, #tpu.memory_space<vmem>>, vector<1x1x256xf32>,
    %141 = vector.extract_strided_slice %6 {offsets = [14, 0], sizes = [1, 256], strides = [1, 1]} : vector<20x256xf32> to vector<1x256xf32>
    %c244_i32 = arith.constant 244 : i32
    %142 = tpu.dynamic_rotate %141 by %c244_i32 dim 1 : vector<1x256xf32>, i32 -> vector<1x256xf32>
    %c0_102 = arith.constant 0 : index
    %c0_103 = arith.constant 0 : index
    %c0_104 = arith.constant 0 : index
    %143 = vector.load %arg6[%c0_102, %c0_103, %c0_104] : memref<1x1x256xf32, #tpu.memory_space<vmem>>, vector<1x1x256xf32>
    %144 = vector.shape_cast %143 : vector<1x1x256xf32> to vector<1x256xf32>
    %c14 = arith.constant 14 : index
    %c0_105 = arith.constant 0 : index
    %145 = vector.load %arg4[%c14, %c0_105] : memref<20x256xf32, #tpu.memory_space<vmem>>, vector<1x256xf32>
    %146 = arith.mulf %142, %145 : vector<1x256xf32>
    %147 = arith.addf %144, %146 : vector<1x256xf32>
    %c0_106 = arith.constant 0 : index
    %c0_107 = arith.constant 0 : index
    %c0_108 = arith.constant 0 : index
    %148 = vector.load %arg6[%c0_106, %c0_107, %c0_108] : memref<1x1x256xf32, #tpu.memory_space<vmem>>, vector<1x1x256xf32>
    %149 = vector.shape_cast %148 : vector<1x1x256xf32> to vector<1x256xf32>
    %150 = vector.shape_cast %147 : vector<1x256xf32> to vector<1x1x256xf32>
    tpu.vector_store %arg6[%c0_106, %c0_107, %c0_108], %150 {strides = array<i32>} : memref<1x1x256xf32, #tpu.memory_space<vmem>>, vector<1x1x256xf32>,
    %151 = vector.extract_strided_slice %6 {offsets = [15, 0], sizes = [1, 256], strides = [1, 1]} : vector<20x256xf32> to vector<1x256xf32>
    %c76_i32 = arith.constant 76 : i32
    %152 = tpu.dynamic_rotate %151 by %c76_i32 dim 1 : vector<1x256xf32>, i32 -> vector<1x256xf32>
    %c0_109 = arith.constant 0 : index
    %c0_110 = arith.constant 0 : index
    %c0_111 = arith.constant 0 : index
    %153 = vector.load %arg6[%c0_109, %c0_110, %c0_111] : memref<1x1x256xf32, #tpu.memory_space<vmem>>, vector<1x1x256xf32>
    %154 = vector.shape_cast %153 : vector<1x1x256xf32> to vector<1x256xf32>
    %c15 = arith.constant 15 : index
    %c0_112 = arith.constant 0 : index
    %155 = vector.load %arg4[%c15, %c0_112] : memref<20x256xf32, #tpu.memory_space<vmem>>, vector<1x256xf32>
    %156 = arith.mulf %152, %155 : vector<1x256xf32>
    %157 = arith.addf %154, %156 : vector<1x256xf32>
    %c0_113 = arith.constant 0 : index
    %c0_114 = arith.constant 0 : index
    %c0_115 = arith.constant 0 : index
    %158 = vector.load %arg6[%c0_113, %c0_114, %c0_115] : memref<1x1x256xf32, #tpu.memory_space<vmem>>, vector<1x1x256xf32>
    %159 = vector.shape_cast %158 : vector<1x1x256xf32> to vector<1x256xf32>
    %160 = vector.shape_cast %157 : vector<1x256xf32> to vector<1x1x256xf32>
    tpu.vector_store %arg6[%c0_113, %c0_114, %c0_115], %160 {strides = array<i32>} : memref<1x1x256xf32, #tpu.memory_space<vmem>>, vector<1x1x256xf32>,
    %161 = vector.extract_strided_slice %6 {offsets = [16, 0], sizes = [1, 256], strides = [1, 1]} : vector<20x256xf32> to vector<1x256xf32>
    %c64_i32 = arith.constant 64 : i32
    %162 = tpu.dynamic_rotate %161 by %c64_i32 dim 1 : vector<1x256xf32>, i32 -> vector<1x256xf32>
    %c0_116 = arith.constant 0 : index
    %c0_117 = arith.constant 0 : index
    %c0_118 = arith.constant 0 : index
    %163 = vector.load %arg6[%c0_116, %c0_117, %c0_118] : memref<1x1x256xf32, #tpu.memory_space<vmem>>, vector<1x1x256xf32>
    %164 = vector.shape_cast %163 : vector<1x1x256xf32> to vector<1x256xf32>
    %c16 = arith.constant 16 : index
    %c0_119 = arith.constant 0 : index
    %165 = vector.load %arg4[%c16, %c0_119] : memref<20x256xf32, #tpu.memory_space<vmem>>, vector<1x256xf32>
    %166 = arith.mulf %162, %165 : vector<1x256xf32>
    %167 = arith.addf %164, %166 : vector<1x256xf32>
    %c0_120 = arith.constant 0 : index
    %c0_121 = arith.constant 0 : index
    %c0_122 = arith.constant 0 : index
    %168 = vector.load %arg6[%c0_120, %c0_121, %c0_122] : memref<1x1x256xf32, #tpu.memory_space<vmem>>, vector<1x1x256xf32>
    %169 = vector.shape_cast %168 : vector<1x1x256xf32> to vector<1x256xf32>
    %170 = vector.shape_cast %167 : vector<1x256xf32> to vector<1x1x256xf32>
    tpu.vector_store %arg6[%c0_120, %c0_121, %c0_122], %170 {strides = array<i32>} : memref<1x1x256xf32, #tpu.memory_space<vmem>>, vector<1x1x256xf32>,
    %171 = vector.extract_strided_slice %6 {offsets = [17, 0], sizes = [1, 256], strides = [1, 1]} : vector<20x256xf32> to vector<1x256xf32>
    %c52_i32 = arith.constant 52 : i32
    %172 = tpu.dynamic_rotate %171 by %c52_i32 dim 1 : vector<1x256xf32>, i32 -> vector<1x256xf32>
    %c0_123 = arith.constant 0 : index
    %c0_124 = arith.constant 0 : index
    %c0_125 = arith.constant 0 : index
    %173 = vector.load %arg6[%c0_123, %c0_124, %c0_125] : memref<1x1x256xf32, #tpu.memory_space<vmem>>, vector<1x1x256xf32>
    %174 = vector.shape_cast %173 : vector<1x1x256xf32> to vector<1x256xf32>
    %c17 = arith.constant 17 : index
    %c0_126 = arith.constant 0 : index
    %175 = vector.load %arg4[%c17, %c0_126] : memref<20x256xf32, #tpu.memory_space<vmem>>, vector<1x256xf32>
    %176 = arith.mulf %172, %175 : vector<1x256xf32>
    %177 = arith.addf %174, %176 : vector<1x256xf32>
    %c0_127 = arith.constant 0 : index
    %c0_128 = arith.constant 0 : index
    %c0_129 = arith.constant 0 : index
    %178 = vector.load %arg6[%c0_127, %c0_128, %c0_129] : memref<1x1x256xf32, #tpu.memory_space<vmem>>, vector<1x1x256xf32>
    %179 = vector.shape_cast %178 : vector<1x1x256xf32> to vector<1x256xf32>
    %180 = vector.shape_cast %177 : vector<1x256xf32> to vector<1x1x256xf32>
    tpu.vector_store %arg6[%c0_127, %c0_128, %c0_129], %180 {strides = array<i32>} : memref<1x1x256xf32, #tpu.memory_space<vmem>>, vector<1x1x256xf32>,
    %181 = vector.extract_strided_slice %6 {offsets = [18, 0], sizes = [1, 256], strides = [1, 1]} : vector<20x256xf32> to vector<1x256xf32>
    %c0_130 = arith.constant 0 : index
    %c0_131 = arith.constant 0 : index
    %c0_132 = arith.constant 0 : index
    %182 = vector.load %arg6[%c0_130, %c0_131, %c0_132] : memref<1x1x256xf32, #tpu.memory_space<vmem>>, vector<1x1x256xf32>
    %183 = vector.shape_cast %182 : vector<1x1x256xf32> to vector<1x256xf32>
    %184 = arith.addf %183, %181 : vector<1x256xf32>
    %c0_133 = arith.constant 0 : index
    %c0_134 = arith.constant 0 : index
    %c0_135 = arith.constant 0 : index
    %185 = vector.load %arg6[%c0_133, %c0_134, %c0_135] : memref<1x1x256xf32, #tpu.memory_space<vmem>>, vector<1x1x256xf32>
    %186 = vector.shape_cast %185 : vector<1x1x256xf32> to vector<1x256xf32>
    %187 = vector.shape_cast %184 : vector<1x256xf32> to vector<1x1x256xf32>
    tpu.vector_store %arg6[%c0_133, %c0_134, %c0_135], %187 {strides = array<i32>} : memref<1x1x256xf32, #tpu.memory_space<vmem>>, vector<1x1x256xf32>,
    %188 = vector.extract_strided_slice %6 {offsets = [19, 0], sizes = [1, 256], strides = [1, 1]} : vector<20x256xf32> to vector<1x256xf32>
    %c0_136 = arith.constant 0 : index
    %c0_137 = arith.constant 0 : index
    %c0_138 = arith.constant 0 : index
    %189 = vector.load %arg6[%c0_136, %c0_137, %c0_138] : memref<1x1x256xf32, #tpu.memory_space<vmem>>, vector<1x1x256xf32>
    %190 = vector.shape_cast %189 : vector<1x1x256xf32> to vector<1x256xf32>
    %191 = arith.addf %190, %188 : vector<1x256xf32>
    %c0_139 = arith.constant 0 : index
    %c0_140 = arith.constant 0 : index
    %c0_141 = arith.constant 0 : index
    %192 = vector.load %arg6[%c0_139, %c0_140, %c0_141] : memref<1x1x256xf32, #tpu.memory_space<vmem>>, vector<1x1x256xf32>
    %193 = vector.shape_cast %192 : vector<1x1x256xf32> to vector<1x256xf32>
    %194 = vector.shape_cast %191 : vector<1x256xf32> to vector<1x1x256xf32>
    tpu.vector_store %arg6[%c0_139, %c0_140, %c0_141], %194 {strides = array<i32>} : memref<1x1x256xf32, #tpu.memory_space<vmem>>, vector<1x1x256xf32>,
    return
  }
  func.func @transform_0(%arg0: i32, %arg1: i32) -> (i32, i32, i32) {
    %c0_i32 = arith.constant 0 : i32
    %c0_i32_0 = arith.constant 0 : i32
    return %arg0, %arg1, %c0_i32 : i32, i32, i32
  }
  func.func @transform_1(%arg0: i32, %arg1: i32) -> (i32, i32) {
    %c0_i32 = arith.constant 0 : i32
    %c0_i32_0 = arith.constant 0 : i32
    return %c0_i32, %arg1 : i32, i32
  }
  func.func @transform_2(%arg0: i32, %arg1: i32) -> (i32, i32) {
    %c0_i32 = arith.constant 0 : i32
    %c0_i32_0 = arith.constant 0 : i32
    %c0_i32_1 = arith.constant 0 : i32
    return %c0_i32, %c0_i32_0 : i32, i32
  }
  func.func @transform_3(%arg0: i32, %arg1: i32) -> (i32, i32, i32) {
    %c0_i32 = arith.constant 0 : i32
    %c0_i32_0 = arith.constant 0 : i32
    %c0_i32_1 = arith.constant 0 : i32
    %c0_i32_2 = arith.constant 0 : i32
    return %c0_i32, %c0_i32_0, %c0_i32_1 : i32, i32, i32
  }
  func.func @transform_4(%arg0: i32, %arg1: i32) -> (i32, i32, i32) {
    %c0_i32 = arith.constant 0 : i32
    %c0_i32_0 = arith.constant 0 : i32
    %c0_i32_1 = arith.constant 0 : i32
    return %arg0, %c0_i32, %c0_i32_0 : i32, i32, i32
  }
}

</mosaic_0001>

<llo_original>
// kernel: tpu_custom_call.1
$region0: #{tpu_custom_call.1}
  #allocation0 [shape = 'u32[]', space=smem, size = 0x4, offset = 0x4, fixed_abs, tag = 'smem constant byte address 0x4 - core index']
  #allocation1 [shape = 'u32[72,128]{1,0:T(1,128)}', space=vmem, size = 0x9000, scoped, tag = 'internal scratch']
  #allocation2 [shape = 'f32[1,1,1]{2,1,0:T(1,128)S(1)}', space=vmem, size = 0x200, scoped, tag = 'scoped memory for tpu_custom_call.1']
  %s0 = inlined_call_operand.hbm [shape: bf16[2,2048,256], index: 0, kind: input, shape index: {}]
  %s1 = inlined_call_operand.hbm [shape: bf16[20,2048], index: 1, kind: input, shape index: {}]
  %s2 = inlined_call_operand.hbm [shape: f32[20,256], index: 2, kind: input, shape index: {}]
  %s3 = inlined_call_operand.<no memory space> [shape: f32[1,1,1], index: 3, kind: input, shape index: {}]
  %s4 = inlined_call_operand.hbm [shape: f32[2,1,256], index: 4, kind: output, shape index: {}]
  %s5 = sld [smem:[#allocation0]]
  $region65: #{tpu_custom_call.1} parent=0
    _
  %s7 = ssub.s32 1, %s5
  %s8 = scalar_select 0, %s7, %s5
  %v9 = vstv %s3
  %10 = vst [vmem:[#allocation2] sm:$0x1] %v9
  $region1: #{tpu_custom_call.1} parent=0
    #allocation3 [shape = 'u8[524288]{0}', space=vmem, size = 0x80000, scoped, tag = 'input window, operand 0']
    #allocation4 [shape = 's32[2]{0}', space=sflag, size = 0x8, scoped, tag = 'scoped memory for tpu_custom_call.1']
    #allocation5 [shape = 's32[2]{0}', space=sflag, size = 0x8, scoped, tag = 'scoped memory for tpu_custom_call.1']
    #allocation6 [shape = 'u8[49152]{0}', space=vmem, size = 0xc000, scoped, tag = 'input window, operand 1']
    #allocation7 [shape = 's32[2]{0}', space=sflag, size = 0x8, scoped, tag = 'scoped memory for tpu_custom_call.1']
    #allocation8 [shape = 'u8[24576]{0}', space=vmem, size = 0x6000, scoped, tag = 'input window, operand 2, single buffered']
    #allocation9 [shape = 'u8[2048]{0}', space=vmem, size = 0x800, scoped, tag = 'output window, operand 0']
    %11 = vsyncpa [#allocation4], 0
    %s12 = scalar_lea.sflag [#allocation4], 1
    %13 = vsyncpa %s12, 0
    %14 = vsyncpa [#allocation7], 0
    %s15 = scalar_lea.sflag [#allocation7], 1
    %16 = vsyncpa %s15, 0
    %17 = vsyncpa [#allocation5], 0
    %s18 = scalar_lea.sflag [#allocation5], 1
    %19 = vsyncpa %s18, 0
    loop: start=0, step=1, limit=10
    $region2: #{tpu_custom_call.1} parent=1 // loop_pre_header
      _
    $region3: #{tpu_custom_call.1} parent=1 // loop_header
      %s21 = sphi 0, %s25
      %p22 = scmp.ge.s32.totalorder %s21, 10
      %s28 = sphi 0, %s40
      %s29 = sphi 0, %s36
      %s30 = sphi 0, %s28
      %s31 = sphi 0, %s29
      %s32 = sphi 0, %s30
      %s33 = sphi 0, %s31
      %s45 = sphi 0, %s47
      %s48 = sphi 0, %s45
      %s49 = sphi 0, %s48
      %s65 = sphi 0, %s49
      %s71 = sphi 0, %s73
      %s74 = sphi 0, %s71
      %s75 = sphi 0, %s74
      %s91 = sphi 0, %s75
      %s95 = sphi 0, %s95
      %s97 = sphi 0, %s95
      %s98 = sphi 0, %s97
      %s112 = sphi 0, %s98
      %s116 = sphi 0, %s116
      %s118 = sphi 0, %s116
      %s119 = sphi 0, %s118
      %s133 = sphi 0, %s119
      %s139 = sphi 0, %s141
      %s142 = sphi 0, %s139
      %s143 = sphi 0, %s142
      %s159 = sphi 0, %s143
    $region4: #{tpu_custom_call.1} parent=1 // loop_header_branch
      %24 = sbr.rel (%p22) target = $region8
    $region5: #{tpu_custom_call.1} parent=1 // loop_body
      %s26 = ssub.s32 %s21, 1
      %s27 = ssub.s32 %s21, 2
      %s34 = sadd.s32 1, %s29
      %p35 = scmp.ge.s32.totalorder %s34, 4
      %s36 = scalar_select %p35, 0, %s34
      %s37 = sadd.s32 1, %s28
      %s38 = scalar_select %p35, %s37, %s28
      %p39 = scmp.ge.s32.totalorder %s38, 2
      %s40 = scalar_select %p39, 0, %s38
      %s41 = ssub.s32 %s28, %s40
      %s42 = ssub.s32 %s29, %s36
      %s43 = sor.u32 %s41, %s42
      %p44 = scmp.eq.s32.totalorder %s43, 0
      %s46 = sadd.s32 %s45, 1
      %s47 = scalar_select %p44, %s45, %s46
      %p50 = pneg %p44
      %p51 = scmp.eq.s32.totalorder %s21, 7
      %p52 = por %p50, %p51
      %p53 = scmp.ne.s32.totalorder %s45, %s48
      %p54 = scmp.eq.s32.totalorder %s21, 0
      %p55 = por %p53, %p54
      %p56 = scmp.ne.s32.totalorder %s45, %s48
      %p57 = scmp.eq.s32.totalorder %s26, 7
      %p58 = por %p56, %p57
      %p59 = scmp.ne.s32.totalorder %s48, %s49
      %p60 = scmp.eq.s32.totalorder %s26, 0
      %p61 = por %p59, %p60
      %p62 = scmp.ne.s32.totalorder %s48, %s49
      %p63 = scmp.eq.s32.totalorder %s27, 7
      %p64 = por %p62, %p63
      %p66 = scmp.ne.s32.totalorder %s49, %s65
      %p67 = scmp.eq.s32.totalorder %s27, 0
      %p68 = por %p66, %p67
      %s69 = ssub.s32 %s29, %s36
      %p70 = scmp.eq.s32.totalorder %s69, 0
      %s72 = sadd.s32 %s71, 1
      %s73 = scalar_select %p70, %s71, %s72
      %p76 = pneg %p70
      %p77 = scmp.eq.s32.totalorder %s21, 7
      %p78 = por %p76, %p77
      %p79 = scmp.ne.s32.totalorder %s71, %s74
      %p80 = scmp.eq.s32.totalorder %s21, 0
      %p81 = por %p79, %p80
      %p82 = scmp.ne.s32.totalorder %s71, %s74
      %p83 = scmp.eq.s32.totalorder %s26, 7
      %p84 = por %p82, %p83
      %p85 = scmp.ne.s32.totalorder %s74, %s75
      %p86 = scmp.eq.s32.totalorder %s26, 0
      %p87 = por %p85, %p86
      %p88 = scmp.ne.s32.totalorder %s74, %s75
      %p89 = scmp.eq.s32.totalorder %s27, 7
      %p90 = por %p88, %p89
      %p92 = scmp.ne.s32.totalorder %s75, %s91
      %p93 = scmp.eq.s32.totalorder %s27, 0
      %p94 = por %p92, %p93
      %s96 = sadd.s32 %s95, 1
      %p99 = scmp.eq.s32.totalorder %s21, 7
      %p100 = scmp.ne.s32.totalorder %s95, %s97
      %p101 = scmp.eq.s32.totalorder %s21, 0
      %p102 = por %p100, %p101
      %p103 = scmp.ne.s32.totalorder %s95, %s97
      %p104 = scmp.eq.s32.totalorder %s26, 7
      %p105 = por %p103, %p104
      %p106 = scmp.ne.s32.totalorder %s97, %s98
      %p107 = scmp.eq.s32.totalorder %s26, 0
      %p108 = por %p106, %p107
      %p109 = scmp.ne.s32.totalorder %s97, %s98
      %p110 = scmp.eq.s32.totalorder %s27, 7
      %p111 = por %p109, %p110
      %p113 = scmp.ne.s32.totalorder %s98, %s112
      %p114 = scmp.eq.s32.totalorder %s27, 0
      %p115 = por %p113, %p114
      %s117 = sadd.s32 %s116, 1
      %p120 = scmp.eq.s32.totalorder %s21, 7
      %p121 = scmp.ne.s32.totalorder %s116, %s118
      %p122 = scmp.eq.s32.totalorder %s21, 0
      %p123 = por %p121, %p122
      %p124 = scmp.ne.s32.totalorder %s116, %s118
      %p125 = scmp.eq.s32.totalorder %s26, 7
      %p126 = por %p124, %p125
      %p127 = scmp.ne.s32.totalorder %s118, %s119
      %p128 = scmp.eq.s32.totalorder %s26, 0
      %p129 = por %p127, %p128
      %p130 = scmp.ne.s32.totalorder %s118, %s119
      %p131 = scmp.eq.s32.totalorder %s27, 7
      %p132 = por %p130, %p131
      %p134 = scmp.ne.s32.totalorder %s119, %s133
      %p135 = scmp.eq.s32.totalorder %s27, 0
      %p136 = por %p134, %p135
      %s137 = ssub.s32 %s28, %s40
      %p138 = scmp.eq.s32.totalorder %s137, 0
      %s140 = sadd.s32 %s139, 1
      %s141 = scalar_select %p138, %s139, %s140
      %p144 = pneg %p138
      %p145 = scmp.eq.s32.totalorder %s21, 7
      %p146 = por %p144, %p145
      %p147 = scmp.ne.s32.totalorder %s139, %s142
      %p148 = scmp.eq.s32.totalorder %s21, 0
      %p149 = por %p147, %p148
      %p150 = scmp.ne.s32.totalorder %s139, %s142
      %p151 = scmp.eq.s32.totalorder %s26, 7
      %p152 = por %p150, %p151
      %p153 = scmp.ne.s32.totalorder %s142, %s143
      %p154 = scmp.eq.s32.totalorder %s26, 0
      %p155 = por %p153, %p154
      %p156 = scmp.ne.s32.totalorder %s142, %s143
      %p157 = scmp.eq.s32.totalorder %s27, 7
      %p158 = por %p156, %p157
      %p160 = scmp.ne.s32.totalorder %s143, %s159
      %p161 = scmp.eq.s32.totalorder %s27, 0
      %p162 = por %p160, %p161
      %p163 = scmp.le.s32.totalorder 1, %s21
      %p164 = scmp.lt.s32.totalorder %s21, 9
      %p165 = pnand %p163, %p164
      %p166 = pneg %p165
      // Predicated region
      $region9: #{tpu_custom_call.1} parent=5 // pred_check
        _
      $region10: #{tpu_custom_call.1} parent=5 // pred_check_branch
        %168 = sbr.rel (%p165) target = $region12
      $region11: #{tpu_custom_call.1} parent=5 // pred_region
        %s169 = ssub.s32 %s21, 1
        // Predicated region
        $region13: #{tpu_custom_call.1} parent=11 // pred_check
          %p170 = pneg %p108
        $region14: #{tpu_custom_call.1} parent=11 // pred_check_branch
          %172 = sbr.rel (%p170) target = $region16
        $region15: #{tpu_custom_call.1} parent=11 // pred_region
          %174 = vsyncadd [#allocation7], 0
          %s175 = sshll.u32 %s2, 4
          %s176 = int_to_ptr.hbm [resolvable:$true] %s175
          %s177 = sshll.u32 [#allocation8], 4
          %s178 = int_to_ptr.vmem [resolvable:$true] %s177
          %183 = dma.hbm_to_vmem [thread:$0]  %s176, 768, %s178, [#allocation7], 256, 256, 16
        $region16: #{tpu_custom_call.1} parent=11 // pred_fallthru
          _
        // Predicated region
        $region17: #{tpu_custom_call.1} parent=11 // pred_check
          %p184 = pneg %p129
        $region18: #{tpu_custom_call.1} parent=11 // pred_check_branch
          %186 = sbr.rel (%p184) target = $region20
        $region19: #{tpu_custom_call.1} parent=11 // pred_region
          _
        $region20: #{tpu_custom_call.1} parent=11 // pred_fallthru
          _
      $region12: #{tpu_custom_call.1} parent=5 // pred_fallthru
        _
      %p187 = scmp.lt.s32.totalorder %s21, 8
      // Predicated region
      $region21: #{tpu_custom_call.1} parent=5 // pred_check
        %p188 = pneg %p187
      $region22: #{tpu_custom_call.1} parent=5 // pred_check_branch
        %190 = sbr.rel (%p188) target = $region24
      $region23: #{tpu_custom_call.1} parent=5 // pred_region
        // Predicated region
        $region25: #{tpu_custom_call.1} parent=23 // pred_check
          %p191 = pneg %p55
        $region26: #{tpu_custom_call.1} parent=23 // pred_check_branch
          %193 = sbr.rel (%p191) target = $region28
        $region27: #{tpu_custom_call.1} parent=23 // pred_region
          %s194 = sand.u32 %s45, 1
          %s195 = scalar_lea.sflag [#allocation4], %s194
          %s196 = sand.u32 %s45, 1
          %s197 = smul.addr %s196, 512
          %s198 = scalar_lea.vmem [#allocation3], %s197
          %s199 = smul.u32 64, %s29
          %201 = vsyncadd %s195, 0
          %s202 = smul.addr %s199, 2
          %s203 = smul.addr %s28, 512
          %s204 = sadd.s32 %s202, %s203
          %s205 = smul.addr %s204, 4
          %s206 = scalar_lea.hbm %s0, %s205
          %s207 = sshll.u32 %s206, 4
          %s208 = int_to_ptr.hbm [resolvable:$true] %s207
          %s209 = sshll.u32 %s198, 4
          %s210 = int_to_ptr.vmem [resolvable:$true] %s209
          %215 = dma.hbm_to_vmem [thread:$0]  %s208, 8192, %s210, %s195, 128, 128, 8
        $region28: #{tpu_custom_call.1} parent=23 // pred_fallthru
          _
        // Predicated region
        $region29: #{tpu_custom_call.1} parent=23 // pred_check
          %p216 = pneg %p81
        $region30: #{tpu_custom_call.1} parent=23 // pred_check_branch
          %218 = sbr.rel (%p216) target = $region32
        $region31: #{tpu_custom_call.1} parent=23 // pred_region
          %s219 = sand.u32 %s21, 1
          %s220 = scalar_lea.sflag [#allocation7], %s219
          %s221 = sand.u32 %s71, 1
          %s222 = smul.addr %s221, 48
          %s223 = scalar_lea.vmem [#allocation6], %s222
          %s224 = smul.u32 4, %s29
          %226 = vsyncadd %s220, 0
          %s227 = smul.addr %s224, 4
          %s228 = scalar_lea.hbm %s1, %s227
          %s229 = sshll.u32 %s228, 4
          %s230 = int_to_ptr.hbm [resolvable:$true] %s229
          %s231 = sshll.u32 %s223, 4
          %s232 = int_to_ptr.vmem [resolvable:$true] %s231
          %237 = dma.hbm_to_vmem [thread:$0]  %s230, 768, %s232, %s220, 1024, 256, 16
        $region32: #{tpu_custom_call.1} parent=23 // pred_fallthru
          _
      $region24: #{tpu_custom_call.1} parent=5 // pred_fallthru
        _
      %p238 = scmp.le.s32.totalorder 1, %s21
      %p239 = scmp.lt.s32.totalorder %s21, 9
      %p240 = pnand %p238, %p239
      %p241 = pneg %p240
      // Predicated region
      $region33: #{tpu_custom_call.1} parent=5 // pred_check
        _
      $region34: #{tpu_custom_call.1} parent=5 // pred_check_branch
        %243 = sbr.rel (%p240) target = $region36
      $region35: #{tpu_custom_call.1} parent=5 // pred_region
        %s244 = ssub.s32 %s21, 1
        %s245 = sand.u32 %s48, 1
        %s246 = scalar_lea.sflag [#allocation4], %s245
        %s247 = sand.u32 %s48, 1
        %s248 = smul.addr %s247, 512
        %s249 = scalar_lea.vmem [#allocation3], %s248
        // Predicated region
        $region37: #{tpu_custom_call.1} parent=35 // pred_check
          %p250 = pneg %p61
        $region38: #{tpu_custom_call.1} parent=35 // pred_check_branch
          %252 = sbr.rel (%p250) target = $region40
        $region39: #{tpu_custom_call.1} parent=35 // pred_region
          %254 = dma.done %s246, 8192
        $region40: #{tpu_custom_call.1} parent=35 // pred_fallthru
          _
        %s255 = sand.u32 %s26, 1
        %s256 = scalar_lea.sflag [#allocation7], %s255
        %s257 = sand.u32 %s74, 1
        %s258 = smul.addr %s257, 48
        %s259 = scalar_lea.vmem [#allocation6], %s258
        // Predicated region
        $region41: #{tpu_custom_call.1} parent=35 // pred_check
          %p260 = pneg %p87
        $region42: #{tpu_custom_call.1} parent=35 // pred_check_branch
          %262 = sbr.rel (%p260) target = $region44
        $region43: #{tpu_custom_call.1} parent=35 // pred_region
          %264 = dma.done %s256, 768
        $region44: #{tpu_custom_call.1} parent=35 // pred_fallthru
          _
        // Predicated region
        $region45: #{tpu_custom_call.1} parent=35 // pred_check
          %p265 = pneg %p108
        $region46: #{tpu_custom_call.1} parent=35 // pred_check_branch
          %267 = sbr.rel (%p265) target = $region48
        $region47: #{tpu_custom_call.1} parent=35 // pred_region
          %269 = dma.done [#allocation7], 768
        $region48: #{tpu_custom_call.1} parent=35 // pred_fallthru
          _
        %s270 = sand.u32 %s48, 1
        %s271 = scalar_lea.sflag [#allocation4], %s270
        %s272 = sand.u32 %s48, 1
        %s273 = smul.addr %s272, 512
        %s274 = scalar_lea.vmem [#allocation3], %s273
        %p275 = pneg %p61
        %p276 = pneg %p58
        %s277 = sand.u32 %s26, 1
        %s278 = scalar_lea.sflag [#allocation7], %s277
        %s279 = sand.u32 %s74, 1
        %s280 = smul.addr %s279, 48
        %s281 = scalar_lea.vmem [#allocation6], %s280
        %p282 = pneg %p87
        %p283 = pneg %p84
        %p284 = pneg %p108
        %p285 = pneg %p105
        %p286 = pneg %p129
        %p287 = pneg %p126
        %p288 = pneg %p155
        %p289 = pneg %p152
        %s290 = sand.u32 %s142, 1
        %s291 = scalar_lea.sflag [#allocation5], %s290
        %s292 = sand.u32 %s142, 1
        %s293 = smul.addr %s292, 2
        %s294 = scalar_lea.vmem [#allocation9], %s293
        %s295 = smul.u32 64, %s31
        %s296 = smul.u32 4, %s31
        %p297 = scmp.eq.s32.totalorder %s31, 0
        // Predicated region
        $region49: #{tpu_custom_call.1} parent=35 // pred_check
          %p298 = pneg %p297
        $region50: #{tpu_custom_call.1} parent=35 // pred_check_branch
          %300 = sbr.rel (%p298) target = $region52
        $region51: #{tpu_custom_call.1} parent=35 // pred_region
          %v301 = vld [vmem:[#allocation2] sm:$0x1]
          %303 = vset.pattern.permute.xlu0 0
          %304 = vperm.xlu0 %303, %v301
          %v305 = vpop.permute.xlu0 %304
          %v307 = vperm.slane %v305, 0
          %v308 = vlaneseq
          %vm309 = vcmp.ge.s32.totalorder %v308, 0
          %vm310 = vcmp.lt.s32.totalorder %v308, 256
          %vm311 = vmand %vm309, %vm310
          %312 = vst.msk [vmem:[%s294] sm:$0x3] %vm311, %v307
        $region52: #{tpu_custom_call.1} parent=35 // pred_fallthru
          _
        %v313 = vld [vmem:[%s249] sm:$0xff]
        %v314 = vld [vmem:[%s249 + $0x8] sm:$0xff]
        %v315 = vld [vmem:[%s249 + $0x10] sm:$0xff]
        %v316 = vld [vmem:[%s249 + $0x18] sm:$0xff]
        %v317 = vld [vmem:[%s249 + $0x20] sm:$0xff]
        %v318 = vld [vmem:[%s249 + $0x28] sm:$0xff]
        %v319 = vld [vmem:[%s249 + $0x30] sm:$0xff]
        %v320 = vld [vmem:[%s249 + $0x38] sm:$0xff]
        %v321 = vld [vmem:[%s249 + $0x40] sm:$0xff]
        %v322 = vld [vmem:[%s249 + $0x48] sm:$0xff]
        %v323 = vld [vmem:[%s249 + $0x50] sm:$0xff]
        %v324 = vld [vmem:[%s249 + $0x58] sm:$0xff]
        %v325 = vld [vmem:[%s249 + $0x60] sm:$0xff]
        %v326 = vld [vmem:[%s249 + $0x68] sm:$0xff]
        %v327 = vld [vmem:[%s249 + $0x70] sm:$0xff]
        %v328 = vld [vmem:[%s249 + $0x78] sm:$0xff]
        %v329 = vld [vmem:[%s249 + $0x80] sm:$0xff]
        %v330 = vld [vmem:[%s249 + $0x88] sm:$0xff]
        %v331 = vld [vmem:[%s249 + $0x90] sm:$0xff]
        %v332 = vld [vmem:[%s249 + $0x98] sm:$0xff]
        %v333 = vld [vmem:[%s249 + $0xa0] sm:$0xff]
        %v334 = vld [vmem:[%s249 + $0xa8] sm:$0xff]
        %v335 = vld [vmem:[%s249 + $0xb0] sm:$0xff]
        %v336 = vld [vmem:[%s249 + $0xb8] sm:$0xff]
        %v337 = vld [vmem:[%s249 + $0xc0] sm:$0xff]
        %v338 = vld [vmem:[%s249 + $0xc8] sm:$0xff]
        %v339 = vld [vmem:[%s249 + $0xd0] sm:$0xff]
        %v340 = vld [vmem:[%s249 + $0xd8] sm:$0xff]
        %v341 = vld [vmem:[%s249 + $0xe0] sm:$0xff]
        %v342 = vld [vmem:[%s249 + $0xe8] sm:$0xff]
        %v343 = vld [vmem:[%s249 + $0xf0] sm:$0xff]
        %v344 = vld [vmem:[%s249 + $0xf8] sm:$0xff]
        %v345 = vld [vmem:[%s249 + $0x100] sm:$0xff]
        %v346 = vld [vmem:[%s249 + $0x108] sm:$0xff]
        %v347 = vld [vmem:[%s249 + $0x110] sm:$0xff]
        %v348 = vld [vmem:[%s249 + $0x118] sm:$0xff]
        %v349 = vld [vmem:[%s249 + $0x120] sm:$0xff]
        %v350 = vld [vmem:[%s249 + $0x128] sm:$0xff]
        %v351 = vld [vmem:[%s249 + $0x130] sm:$0xff]
        %v352 = vld [vmem:[%s249 + $0x138] sm:$0xff]
        %v353 = vld [vmem:[%s249 + $0x140] sm:$0xff]
        %v354 = vld [vmem:[%s249 + $0x148] sm:$0xff]
        %v355 = vld [vmem:[%s249 + $0x150] sm:$0xff]
        %v356 = vld [vmem:[%s249 + $0x158] sm:$0xff]
        %v357 = vld [vmem:[%s249 + $0x160] sm:$0xff]
        %v358 = vld [vmem:[%s249 + $0x168] sm:$0xff]
        %v359 = vld [vmem:[%s249 + $0x170] sm:$0xff]
        %v360 = vld [vmem:[%s249 + $0x178] sm:$0xff]
        %v361 = vld [vmem:[%s249 + $0x180] sm:$0xff]
        %v362 = vld [vmem:[%s249 + $0x188] sm:$0xff]
        %v363 = vld [vmem:[%s249 + $0x190] sm:$0xff]
        %v364 = vld [vmem:[%s249 + $0x198] sm:$0xff]
        %v365 = vld [vmem:[%s249 + $0x1a0] sm:$0xff]
        %v366 = vld [vmem:[%s249 + $0x1a8] sm:$0xff]
        %v367 = vld [vmem:[%s249 + $0x1b0] sm:$0xff]
        %v368 = vld [vmem:[%s249 + $0x1b8] sm:$0xff]
        %v369 = vld [vmem:[%s249 + $0x1c0] sm:$0xff]
        %v370 = vld [vmem:[%s249 + $0x1c8] sm:$0xff]
        %v371 = vld [vmem:[%s249 + $0x1d0] sm:$0xff]
        %v372 = vld [vmem:[%s249 + $0x1d8] sm:$0xff]
        %v373 = vld [vmem:[%s249 + $0x1e0] sm:$0xff]
        %v374 = vld [vmem:[%s249 + $0x1e8] sm:$0xff]
        %v375 = vld [vmem:[%s249 + $0x1f0] sm:$0xff]
        %v376 = vld [vmem:[%s249 + $0x1f8] sm:$0xff]
        %v377 = vld [vmem:[%s259] sm:$0xff]
        %v378 = vld [vmem:[%s259 + $0x8] sm:$0xff]
        %v379 = vld [vmem:[%s259 + $0x10] sm:$0xff]
        %v380 = vld [vmem:[%s259 + $0x18] sm:$0xff]
        %v381 = vld [vmem:[%s259 + $0x20] sm:$0x33]
        %v382 = vld [vmem:[%s259 + $0x28] sm:$0x33]
        %v389 = vunpack.c.l.b16 %v377
        %v390 = vunpack.c.h.b16 %v377
        %v391 = vunpack.c.l.b16 %v378
        %v392 = vunpack.c.h.b16 %v378
        %v393 = vunpack.c.l.b16 %v379
        %v394 = vunpack.c.h.b16 %v379
        %v395 = vunpack.c.l.b16 %v380
        %v396 = vunpack.c.h.b16 %v380
        %v397 = vunpack.c.l.b16 %v381
        %v398 = vunpack.c.h.b16 %v381
        %v399 = vunpack.c.l.b16 %v382
        %v400 = vunpack.c.h.b16 %v382
        %v401 = vpack.c.b16 %v393, %v389
        %v402 = vpack.c.b16 %v394, %v390
        %v403 = vpack.c.b16 %v395, %v391
        %v404 = vpack.c.b16 %v396, %v392
        %v405 = vpack.c.b16 %v397, %v397
        %v406 = vpack.c.b16 %v398, %v398
        %v407 = vpack.c.b16 %v399, %v399
        %v408 = vpack.c.b16 %v400, %v400
        %v481 = vunpack.c.l.b16 %v313
        %v482 = vunpack.c.h.b16 %v313
        %v483 = vunpack.c.l.b16 %v314
        %v484 = vunpack.c.h.b16 %v314
        %v485 = vunpack.c.l.b16 %v315
        %v486 = vunpack.c.h.b16 %v315
        %v487 = vunpack.c.l.b16 %v316
        %v488 = vunpack.c.h.b16 %v316
        %v489 = vunpack.c.l.b16 %v317
        %v490 = vunpack.c.h.b16 %v317
        %v491 = vunpack.c.l.b16 %v318
        %v492 = vunpack.c.h.b16 %v318
        %v493 = vunpack.c.l.b16 %v319
        %v494 = vunpack.c.h.b16 %v319
        %v495 = vunpack.c.l.b16 %v320
        %v496 = vunpack.c.h.b16 %v320
        %v497 = vunpack.c.l.b16 %v321
        %v498 = vunpack.c.h.b16 %v321
        %v499 = vunpack.c.l.b16 %v322
        %v500 = vunpack.c.h.b16 %v322
        %v501 = vunpack.c.l.b16 %v323
        %v502 = vunpack.c.h.b16 %v323
        %v503 = vunpack.c.l.b16 %v324
        %v504 = vunpack.c.h.b16 %v324
        %v505 = vunpack.c.l.b16 %v325
        %v506 = vunpack.c.h.b16 %v325
        %v507 = vunpack.c.l.b16 %v326
        %v508 = vunpack.c.h.b16 %v326
        %v509 = vunpack.c.l.b16 %v327
        %v510 = vunpack.c.h.b16 %v327
        %v511 = vunpack.c.l.b16 %v328
        %v512 = vunpack.c.h.b16 %v328
        %v513 = vunpack.c.l.b16 %v329
        %v514 = vunpack.c.h.b16 %v329
        %v515 = vunpack.c.l.b16 %v330
        %v516 = vunpack.c.h.b16 %v330
        %v517 = vunpack.c.l.b16 %v331
        %v518 = vunpack.c.h.b16 %v331
        %v519 = vunpack.c.l.b16 %v332
        %v520 = vunpack.c.h.b16 %v332
        %v521 = vunpack.c.l.b16 %v333
        %v522 = vunpack.c.h.b16 %v333
        %v523 = vunpack.c.l.b16 %v334
        %v524 = vunpack.c.h.b16 %v334
        %v525 = vunpack.c.l.b16 %v335
        %v526 = vunpack.c.h.b16 %v335
        %v527 = vunpack.c.l.b16 %v336
        %v528 = vunpack.c.h.b16 %v336
        %v529 = vunpack.c.l.b16 %v337
        %v530 = vunpack.c.h.b16 %v337
        %v531 = vunpack.c.l.b16 %v338
        %v532 = vunpack.c.h.b16 %v338
        %v533 = vunpack.c.l.b16 %v339
        %v534 = vunpack.c.h.b16 %v339
        %v535 = vunpack.c.l.b16 %v340
        %v536 = vunpack.c.h.b16 %v340
        %v537 = vunpack.c.l.b16 %v341
        %v538 = vunpack.c.h.b16 %v341
        %v539 = vunpack.c.l.b16 %v342
        %v540 = vunpack.c.h.b16 %v342
        %v541 = vunpack.c.l.b16 %v343
        %v542 = vunpack.c.h.b16 %v343
        %v543 = vunpack.c.l.b16 %v344
        %v544 = vunpack.c.h.b16 %v344
        %v545 = vunpack.c.l.b16 %v345
        %v546 = vunpack.c.h.b16 %v345
        %v547 = vunpack.c.l.b16 %v346
        %v548 = vunpack.c.h.b16 %v346
        %v549 = vunpack.c.l.b16 %v347
        %v550 = vunpack.c.h.b16 %v347
        %v551 = vunpack.c.l.b16 %v348
        %v552 = vunpack.c.h.b16 %v348
        %v553 = vunpack.c.l.b16 %v349
        %v554 = vunpack.c.h.b16 %v349
        %v555 = vunpack.c.l.b16 %v350
        %v556 = vunpack.c.h.b16 %v350
        %v557 = vunpack.c.l.b16 %v351
        %v558 = vunpack.c.h.b16 %v351
        %v559 = vunpack.c.l.b16 %v352
        %v560 = vunpack.c.h.b16 %v352
        %v561 = vunpack.c.l.b16 %v353
        %v562 = vunpack.c.h.b16 %v353
        %v563 = vunpack.c.l.b16 %v354
        %v564 = vunpack.c.h.b16 %v354
        %v565 = vunpack.c.l.b16 %v355
        %v566 = vunpack.c.h.b16 %v355
        %v567 = vunpack.c.l.b16 %v356
        %v568 = vunpack.c.h.b16 %v356
        %v569 = vunpack.c.l.b16 %v357
        %v570 = vunpack.c.h.b16 %v357
        %v571 = vunpack.c.l.b16 %v358
        %v572 = vunpack.c.h.b16 %v358
        %v573 = vunpack.c.l.b16 %v359
        %v574 = vunpack.c.h.b16 %v359
        %v575 = vunpack.c.l.b16 %v360
        %v576 = vunpack.c.h.b16 %v360
        %v577 = vunpack.c.l.b16 %v361
        %v578 = vunpack.c.h.b16 %v361
        %v579 = vunpack.c.l.b16 %v362
        %v580 = vunpack.c.h.b16 %v362
        %v581 = vunpack.c.l.b16 %v363
        %v582 = vunpack.c.h.b16 %v363
        %v583 = vunpack.c.l.b16 %v364
        %v584 = vunpack.c.h.b16 %v364
        %v585 = vunpack.c.l.b16 %v365
        %v586 = vunpack.c.h.b16 %v365
        %v587 = vunpack.c.l.b16 %v366
        %v588 = vunpack.c.h.b16 %v366
        %v589 = vunpack.c.l.b16 %v367
        %v590 = vunpack.c.h.b16 %v367
        %v591 = vunpack.c.l.b16 %v368
        %v592 = vunpack.c.h.b16 %v368
        %v593 = vunpack.c.l.b16 %v369
        %v594 = vunpack.c.h.b16 %v369
        %v595 = vunpack.c.l.b16 %v370
        %v596 = vunpack.c.h.b16 %v370
        %v597 = vunpack.c.l.b16 %v371
        %v598 = vunpack.c.h.b16 %v371
        %v599 = vunpack.c.l.b16 %v372
        %v600 = vunpack.c.h.b16 %v372
        %v601 = vunpack.c.l.b16 %v373
        %v602 = vunpack.c.h.b16 %v373
        %v603 = vunpack.c.l.b16 %v374
        %v604 = vunpack.c.h.b16 %v374
        %v605 = vunpack.c.l.b16 %v375
        %v606 = vunpack.c.h.b16 %v375
        %v607 = vunpack.c.l.b16 %v376
        %v608 = vunpack.c.h.b16 %v376
        %v609 = vpack.c.b16 %v483, %v481
        %v610 = vpack.c.b16 %v484, %v482
        %v611 = vpack.c.b16 %v487, %v485
        %v612 = vpack.c.b16 %v488, %v486
        %v613 = vpack.c.b16 %v491, %v489
        %v614 = vpack.c.b16 %v492, %v490
        %v615 = vpack.c.b16 %v495, %v493
        %v616 = vpack.c.b16 %v496, %v494
        %v617 = vpack.c.b16 %v499, %v497
        %v618 = vpack.c.b16 %v500, %v498
        %v619 = vpack.c.b16 %v503, %v501
        %v620 = vpack.c.b16 %v504, %v502
        %v621 = vpack.c.b16 %v507, %v505
        %v622 = vpack.c.b16 %v508, %v506
        %v623 = vpack.c.b16 %v511, %v509
        %v624 = vpack.c.b16 %v512, %v510
        %v625 = vpack.c.b16 %v515, %v513
        %v626 = vpack.c.b16 %v516, %v514
        %v627 = vpack.c.b16 %v519, %v517
        %v628 = vpack.c.b16 %v520, %v518
        %v629 = vpack.c.b16 %v523, %v521
        %v630 = vpack.c.b16 %v524, %v522
        %v631 = vpack.c.b16 %v527, %v525
        %v632 = vpack.c.b16 %v528, %v526
        %v633 = vpack.c.b16 %v531, %v529
        %v634 = vpack.c.b16 %v532, %v530
        %v635 = vpack.c.b16 %v535, %v533
        %v636 = vpack.c.b16 %v536, %v534
        %v637 = vpack.c.b16 %v539, %v537
        %v638 = vpack.c.b16 %v540, %v538
        %v639 = vpack.c.b16 %v543, %v541
        %v640 = vpack.c.b16 %v544, %v542
        %v641 = vpack.c.b16 %v547, %v545
        %v642 = vpack.c.b16 %v548, %v546
        %v643 = vpack.c.b16 %v551, %v549
        %v644 = vpack.c.b16 %v552, %v550
        %v645 = vpack.c.b16 %v555, %v553
        %v646 = vpack.c.b16 %v556, %v554
        %v647 = vpack.c.b16 %v559, %v557
        %v648 = vpack.c.b16 %v560, %v558
        %v649 = vpack.c.b16 %v563, %v561
        %v650 = vpack.c.b16 %v564, %v562
        %v651 = vpack.c.b16 %v567, %v565
        %v652 = vpack.c.b16 %v568, %v566
        %v653 = vpack.c.b16 %v571, %v569
        %v654 = vpack.c.b16 %v572, %v570
        %v655 = vpack.c.b16 %v575, %v573
        %v656 = vpack.c.b16 %v576, %v574
        %v657 = vpack.c.b16 %v579, %v577
        %v658 = vpack.c.b16 %v580, %v578
        %v659 = vpack.c.b16 %v583, %v581
        %v660 = vpack.c.b16 %v584, %v582
        %v661 = vpack.c.b16 %v587, %v585
        %v662 = vpack.c.b16 %v588, %v586
        %v663 = vpack.c.b16 %v591, %v589
        %v664 = vpack.c.b16 %v592, %v590
        %v665 = vpack.c.b16 %v595, %v593
        %v666 = vpack.c.b16 %v596, %v594
        %v667 = vpack.c.b16 %v599, %v597
        %v668 = vpack.c.b16 %v600, %v598
        %v669 = vpack.c.b16 %v603, %v601
        %v670 = vpack.c.b16 %v604, %v602
        %v671 = vpack.c.b16 %v607, %v605
        %v672 = vpack.c.b16 %v608, %v606
        %737 = vmatpush.bf16.msra.mxu0 %v623
        %738 = vmatpush.bf16.msra.mxu0 %v621
        %739 = vmatpush.bf16.msra.mxu0 %v619
        %740 = vmatpush.bf16.msra.mxu0 %v617
        %741 = vmatpush.bf16.msra.mxu0 %v615
        %742 = vmatpush.bf16.msra.mxu0 %v613
        %743 = vmatpush.bf16.msra.mxu0 %v611
        %744 = vmatpush.bf16.msra.mxu0 %v609
        %745 = vmatmul.bf16.gmra.mxu0 %v401
        %v746 = vpop.f32.mrf.mxu0
        %v747 = vadd.f32 0.0, %v746
        %v748 = vpop.f32.mrf.mxu0
        %v749 = vadd.f32 0.0, %v748
        %750 = vmatmul.bf16.gmra.mxu0 %v405
        %v751 = vpop.f32.mrf.mxu0
        %v752 = vadd.f32 0.0, %v751
        %v753 = vpop.f32.mrf.mxu0
        %754 = vdwg.mxu0
        %755 = vmatpush.bf16.msra.mxu0 %v639
        %756 = vmatpush.bf16.msra.mxu0 %v637
        %757 = vmatpush.bf16.msra.mxu0 %v635
        %758 = vmatpush.bf16.msra.mxu0 %v633
        %759 = vmatpush.bf16.msra.mxu0 %v631
        %760 = vmatpush.bf16.msra.mxu0 %v629
        %761 = vmatpush.bf16.msra.mxu0 %v627
        %762 = vmatpush.bf16.msra.mxu0 %v625
        %763 = vmatmul.bf16.gmra.mxu0 %v402
        %v764 = vpop.f32.mrf.mxu0
        %v765 = vadd.f32 %v747, %v764
        %v766 = vpop.f32.mrf.mxu0
        %v767 = vadd.f32 %v749, %v766
        %768 = vmatmul.bf16.gmra.mxu0 %v406
        %v769 = vpop.f32.mrf.mxu0
        %v770 = vadd.f32 %v752, %v769
        %v771 = vpop.f32.mrf.mxu0
        %772 = vdwg.mxu0
        %773 = vmatpush.bf16.msra.mxu0 %v655
        %774 = vmatpush.bf16.msra.mxu0 %v653
        %775 = vmatpush.bf16.msra.mxu0 %v651
        %776 = vmatpush.bf16.msra.mxu0 %v649
        %777 = vmatpush.bf16.msra.mxu0 %v647
        %778 = vmatpush.bf16.msra.mxu0 %v645
        %779 = vmatpush.bf16.msra.mxu0 %v643
        %780 = vmatpush.bf16.msra.mxu0 %v641
        %781 = vmatmul.bf16.gmra.mxu0 %v403
        %v782 = vpop.f32.mrf.mxu0
        %v783 = vadd.f32 %v765, %v782
        %v784 = vpop.f32.mrf.mxu0
        %v785 = vadd.f32 %v767, %v784
        %786 = vmatmul.bf16.gmra.mxu0 %v407
        %v787 = vpop.f32.mrf.mxu0
        %v788 = vadd.f32 %v770, %v787
        %v789 = vpop.f32.mrf.mxu0
        %790 = vdwg.mxu0
        %791 = vmatpush.bf16.msra.mxu0 %v671
        %792 = vmatpush.bf16.msra.mxu0 %v669
        %793 = vmatpush.bf16.msra.mxu0 %v667
        %794 = vmatpush.bf16.msra.mxu0 %v665
        %795 = vmatpush.bf16.msra.mxu0 %v663
        %796 = vmatpush.bf16.msra.mxu0 %v661
        %797 = vmatpush.bf16.msra.mxu0 %v659
        %798 = vmatpush.bf16.msra.mxu0 %v657
        %799 = vmatmul.bf16.gmra.mxu0 %v404
        %v800 = vpop.f32.mrf.mxu0
        %v801 = vadd.f32 %v783, %v800
        %v802 = vpop.f32.mrf.mxu0
        %v803 = vadd.f32 %v785, %v802
        %804 = vmatmul.bf16.gmra.mxu0 %v408
        %v805 = vpop.f32.mrf.mxu0
        %v806 = vadd.f32 %v788, %v805
        %v807 = vpop.f32.mrf.mxu0
        %808 = vdwg.mxu0
        %809 = vmatpush.bf16.msra.mxu0 %v624
        %810 = vmatpush.bf16.msra.mxu0 %v622
        %811 = vmatpush.bf16.msra.mxu0 %v620
        %812 = vmatpush.bf16.msra.mxu0 %v618
        %813 = vmatpush.bf16.msra.mxu0 %v616
        %814 = vmatpush.bf16.msra.mxu0 %v614
        %815 = vmatpush.bf16.msra.mxu0 %v612
        %816 = vmatpush.bf16.msra.mxu0 %v610
        %817 = vmatmul.bf16.gmra.mxu0 %v401
        %v818 = vpop.f32.mrf.mxu0
        %v819 = vadd.f32 0.0, %v818
        %v820 = vpop.f32.mrf.mxu0
        %v821 = vadd.f32 0.0, %v820
        %822 = vmatmul.bf16.gmra.mxu0 %v405
        %v823 = vpop.f32.mrf.mxu0
        %v824 = vadd.f32 0.0, %v823
        %v825 = vpop.f32.mrf.mxu0
        %826 = vdwg.mxu0
        %827 = vmatpush.bf16.msra.mxu0 %v640
        %828 = vmatpush.bf16.msra.mxu0 %v638
        %829 = vmatpush.bf16.msra.mxu0 %v636
        %830 = vmatpush.bf16.msra.mxu0 %v634
        %831 = vmatpush.bf16.msra.mxu0 %v632
        %832 = vmatpush.bf16.msra.mxu0 %v630
        %833 = vmatpush.bf16.msra.mxu0 %v628
        %834 = vmatpush.bf16.msra.mxu0 %v626
        %835 = vmatmul.bf16.gmra.mxu0 %v402
        %v836 = vpop.f32.mrf.mxu0
        %v837 = vadd.f32 %v819, %v836
        %v838 = vpop.f32.mrf.mxu0
        %v839 = vadd.f32 %v821, %v838
        %840 = vmatmul.bf16.gmra.mxu0 %v406
        %v841 = vpop.f32.mrf.mxu0
        %v842 = vadd.f32 %v824, %v841
        %v843 = vpop.f32.mrf.mxu0
        %844 = vdwg.mxu0
        %845 = vmatpush.bf16.msra.mxu0 %v656
        %846 = vmatpush.bf16.msra.mxu0 %v654
        %847 = vmatpush.bf16.msra.mxu0 %v652
        %848 = vmatpush.bf16.msra.mxu0 %v650
        %849 = vmatpush.bf16.msra.mxu0 %v648
        %850 = vmatpush.bf16.msra.mxu0 %v646
        %851 = vmatpush.bf16.msra.mxu0 %v644
        %852 = vmatpush.bf16.msra.mxu0 %v642
        %853 = vmatmul.bf16.gmra.mxu0 %v403
        %v854 = vpop.f32.mrf.mxu0
        %v855 = vadd.f32 %v837, %v854
        %v856 = vpop.f32.mrf.mxu0
        %v857 = vadd.f32 %v839, %v856
        %858 = vmatmul.bf16.gmra.mxu0 %v407
        %v859 = vpop.f32.mrf.mxu0
        %v860 = vadd.f32 %v842, %v859
        %v861 = vpop.f32.mrf.mxu0
        %862 = vdwg.mxu0
        %863 = vmatpush.bf16.msra.mxu0 %v672
        %864 = vmatpush.bf16.msra.mxu0 %v670
        %865 = vmatpush.bf16.msra.mxu0 %v668
        %866 = vmatpush.bf16.msra.mxu0 %v666
        %867 = vmatpush.bf16.msra.mxu0 %v664
        %868 = vmatpush.bf16.msra.mxu0 %v662
        %869 = vmatpush.bf16.msra.mxu0 %v660
        %870 = vmatpush.bf16.msra.mxu0 %v658
        %871 = vmatmul.bf16.gmra.mxu0 %v404
        %v872 = vpop.f32.mrf.mxu0
        %v873 = vadd.f32 %v855, %v872
        %v874 = vpop.f32.mrf.mxu0
        %v875 = vadd.f32 %v857, %v874
        %876 = vmatmul.bf16.gmra.mxu0 %v408
        %v877 = vpop.f32.mrf.mxu0
        %v878 = vadd.f32 %v860, %v877
        %v879 = vpop.f32.mrf.mxu0
        %880 = vdwg.mxu0
        %881 = vrot.lane.b32.xlu0 %v801, 102
        %v882 = vpop.permute.xlu0 %881
        %883 = vrot.lane.b32.xlu0 %v873, 102
        %v884 = vpop.permute.xlu0 %883
        %v885 = vlaneseq
        %v886 = vand.u32 %v885, 127
        %vm887 = vcmp.lt.s32.totalorder %v886, 102
        %v888 = vsel %vm887, %v882, %v884
        %v889 = vsel %vm887, %v884, %v882
        %v890 = vld [vmem:[%s294] sm:$0x3]
        %v891 = vld [vmem:[#allocation8] ss:$8 sm:$0x3]
        %v893 = vperm.slane %v891, 0
        %v894 = vperm.slane %v891, 1
        %v897 = vmul.f32 %v889, %v893
        %v898 = vmul.f32 %v888, %v894
        %v901 = vrot.slane %v898, 7
        %vm902 = vcmask 1040384
        %v903 = vsel %vm902, %v897, %v901
        %v905 = vadd.f32 %v890, %v903
        %v906 = vlaneseq
        %vm907 = vcmp.ge.s32.totalorder %v906, 0
        %vm908 = vcmp.lt.s32.totalorder %v906, 256
        %vm909 = vmand %vm907, %vm908
        %910 = vst.msk [vmem:[%s294] sm:$0x3] %vm909, %v905
        %v913 = vrot.slane %v801, 1
        %v914 = vrot.slane %v873, 1
        %917 = vrot.lane.b32.xlu0 %v913, 96
        %v918 = vpop.permute.xlu0 %917
        %919 = vrot.lane.b32.xlu0 %v914, 96
        %v920 = vpop.permute.xlu0 %919
        %vm921 = vcmp.lt.s32.totalorder %v886, 96
        %v922 = vsel %vm921, %v918, %v920
        %v923 = vsel %vm921, %v920, %v918
        %v924 = vld [vmem:[%s294] sm:$0x3]
        %s925 = scalar_lea.vmem [#allocation8], 1
        %v926 = vld [vmem:[%s925] ss:$8 sm:$0x3]
        %v928 = vperm.slane %v926, 0
        %v929 = vperm.slane %v926, 1
        %v932 = vmul.f32 %v923, %v928
        %v933 = vmul.f32 %v922, %v929
        %v936 = vrot.slane %v933, 7
        %v937 = vsel %vm902, %v932, %v936
        %v939 = vadd.f32 %v924, %v937
        %940 = vst.msk [vmem:[%s294] sm:$0x3] %vm909, %v939
        %v941 = vrot.slane %v801, 2
        %v942 = vrot.slane %v873, 2
        %945 = vrot.lane.b32.xlu0 %v941, 90
        %v946 = vpop.permute.xlu0 %945
        %947 = vrot.lane.b32.xlu0 %v942, 90
        %v948 = vpop.permute.xlu0 %947
        %vm949 = vcmp.lt.s32.totalorder %v886, 90
        %v950 = vsel %vm949, %v946, %v948
        %v951 = vsel %vm949, %v948, %v946
        %v952 = vld [vmem:[%s294] sm:$0x3]
        %s953 = scalar_lea.vmem [#allocation8], 2
        %v954 = vld [vmem:[%s953] ss:$8 sm:$0x3]
        %v956 = vperm.slane %v954, 0
        %v957 = vperm.slane %v954, 1
        %v960 = vmul.f32 %v951, %v956
        %v961 = vmul.f32 %v950, %v957
        %v964 = vrot.slane %v961, 7
        %v965 = vsel %vm902, %v960, %v964
        %v967 = vadd.f32 %v952, %v965
        %968 = vst.msk [vmem:[%s294] sm:$0x3] %vm909, %v967
        %v969 = vrot.slane %v801, 3
        %v970 = vrot.slane %v873, 3
        %973 = vrot.lane.b32.xlu0 %v969, 6
        %v974 = vpop.permute.xlu0 %973
        %975 = vrot.lane.b32.xlu0 %v970, 6
        %v976 = vpop.permute.xlu0 %975
        %vm977 = vcmp.lt.s32.totalorder %v886, 6
        %v978 = vsel %vm977, %v974, %v976
        %v979 = vsel %vm977, %v976, %v974
        %v980 = vld [vmem:[%s294] sm:$0x3]
        %s981 = scalar_lea.vmem [#allocation8], 3
        %v982 = vld [vmem:[%s981] ss:$8 sm:$0x3]
        %v984 = vperm.slane %v982, 0
        %v985 = vperm.slane %v982, 1
        %v988 = vmul.f32 %v979, %v984
        %v989 = vmul.f32 %v978, %v985
        %v992 = vrot.slane %v989, 7
        %v993 = vsel %vm902, %v988, %v992
        %v995 = vadd.f32 %v980, %v993
        %996 = vst.msk [vmem:[%s294] sm:$0x3] %vm909, %v995
        %v997 = vld [vmem:[%s294] sm:$0x3]
        %998 = vst [vmem:[#allocation1] sm:$0xff] %v801
        %999 = vst [vmem:[#allocation1 + $0x9] sm:$0xff] %v873
        %s1000 = scalar_lea.vmem [#allocation1], 4
        %v1001 = vld [vmem:[%s1000] ss:$9 sm:$0xff]
        %v1003 = vadd.f32 %v997, %v1001
        %1004 = vst.msk [vmem:[%s294] sm:$0x3] %vm909, %v1003
        %v1005 = vrot.slane %v801, 5
        %v1006 = vrot.slane %v873, 5
        %1009 = vrot.lane.b32.xlu0 %v1005, 122
        %v1010 = vpop.permute.xlu0 %1009
        %1011 = vrot.lane.b32.xlu0 %v1006, 122
        %v1012 = vpop.permute.xlu0 %1011
        %vm1013 = vcmp.lt.s32.totalorder %v886, 122
        %v1014 = vsel %vm1013, %v1010, %v1012
        %v1015 = vsel %vm1013, %v1012, %v1010
        %v1016 = vld [vmem:[%s294] sm:$0x3]
        %s1017 = scalar_lea.vmem [#allocation8], 5
        %v1018 = vld [vmem:[%s1017] ss:$8 sm:$0x3]
        %v1020 = vperm.slane %v1018, 0
        %v1021 = vperm.slane %v1018, 1
        %v1024 = vmul.f32 %v1014, %v1020
        %v1025 = vmul.f32 %v1015, %v1021
        %v1028 = vrot.slane %v1025, 7
        %v1029 = vsel %vm902, %v1024, %v1028
        %v1031 = vadd.f32 %v1016, %v1029
        %1032 = vst.msk [vmem:[%s294] sm:$0x3] %vm909, %v1031
        %v1033 = vrot.slane %v801, 6
        %v1034 = vrot.slane %v873, 6
        %1037 = vrot.lane.b32.xlu0 %v1033, 38
        %v1038 = vpop.permute.xlu0 %1037
        %1039 = vrot.lane.b32.xlu0 %v1034, 38
        %v1040 = vpop.permute.xlu0 %1039
        %vm1041 = vcmp.lt.s32.totalorder %v886, 38
        %v1042 = vsel %vm1041, %v1038, %v1040
        %v1043 = vsel %vm1041, %v1040, %v1038
        %v1044 = vld [vmem:[%s294] sm:$0x3]
        %s1045 = scalar_lea.vmem [#allocation8], 6
        %v1046 = vld [vmem:[%s1045] ss:$8 sm:$0x3]
        %v1048 = vperm.slane %v1046, 0
        %v1049 = vperm.slane %v1046, 1
        %v1052 = vmul.f32 %v1042, %v1048
        %v1053 = vmul.f32 %v1043, %v1049
        %v1056 = vrot.slane %v1053, 7
        %v1057 = vsel %vm902, %v1052, %v1056
        %v1059 = vadd.f32 %v1044, %v1057
        %1060 = vst.msk [vmem:[%s294] sm:$0x3] %vm909, %v1059
        %v1061 = vrot.slane %v801, 7
        %v1062 = vrot.slane %v873, 7
        %1065 = vrot.lane.b32.xlu0 %v1061, 32
        %v1066 = vpop.permute.xlu0 %1065
        %1067 = vrot.lane.b32.xlu0 %v1062, 32
        %v1068 = vpop.permute.xlu0 %1067
        %vm1069 = vcmp.lt.s32.totalorder %v886, 32
        %v1070 = vsel %vm1069, %v1066, %v1068
        %v1071 = vsel %vm1069, %v1068, %v1066
        %v1072 = vld [vmem:[%s294] sm:$0x3]
        %s1073 = scalar_lea.vmem [#allocation8], 7
        %v1074 = vld [vmem:[%s1073] ss:$8 sm:$0x3]
        %v1076 = vperm.slane %v1074, 0
        %v1077 = vperm.slane %v1074, 1
        %v1080 = vmul.f32 %v1070, %v1076
        %v1081 = vmul.f32 %v1071, %v1077
        %v1084 = vrot.slane %v1081, 7
        %v1085 = vsel %vm902, %v1080, %v1084
        %v1087 = vadd.f32 %v1072, %v1085
        %1088 = vst.msk [vmem:[%s294] sm:$0x3] %vm909, %v1087
        %1089 = vrot.lane.b32.xlu0 %v803, 26
        %v1090 = vpop.permute.xlu0 %1089
        %1091 = vrot.lane.b32.xlu0 %v875, 26
        %v1092 = vpop.permute.xlu0 %1091
        %vm1093 = vcmp.lt.s32.totalorder %v886, 26
        %v1094 = vsel %vm1093, %v1090, %v1092
        %v1095 = vsel %vm1093, %v1092, %v1090
        %v1096 = vld [vmem:[%s294] sm:$0x3]
        %s1097 = scalar_lea.vmem [#allocation8], 16
        %v1098 = vld [vmem:[%s1097] ss:$8 sm:$0x3]
        %v1100 = vperm.slane %v1098, 0
        %v1101 = vperm.slane %v1098, 1
        %v1104 = vmul.f32 %v1094, %v1100
        %v1105 = vmul.f32 %v1095, %v1101
        %v1108 = vrot.slane %v1105, 7
        %v1109 = vsel %vm902, %v1104, %v1108
        %v1111 = vadd.f32 %v1096, %v1109
        %1112 = vst.msk [vmem:[%s294] sm:$0x3] %vm909, %v1111
        %v1115 = vrot.slane %v803, 1
        %v1116 = vrot.slane %v875, 1
        %1119 = vrot.lane.b32.xlu0 %v1115, 76
        %v1120 = vpop.permute.xlu0 %1119
        %1121 = vrot.lane.b32.xlu0 %v1116, 76
        %v1122 = vpop.permute.xlu0 %1121
        %vm1123 = vcmp.lt.s32.totalorder %v886, 76
        %v1124 = vsel %vm1123, %v1120, %v1122
        %v1125 = vsel %vm1123, %v1122, %v1120
        %v1126 = vld [vmem:[%s294] sm:$0x3]
        %s1127 = scalar_lea.vmem [#allocation8], 17
        %v1128 = vld [vmem:[%s1127] ss:$8 sm:$0x3]
        %v1130 = vperm.slane %v1128, 0
        %v1131 = vperm.slane %v1128, 1
        %v1134 = vmul.f32 %v1124, %v1130
        %v1135 = vmul.f32 %v1125, %v1131
        %v1138 = vrot.slane %v1135, 7
        %v1139 = vsel %vm902, %v1134, %v1138
        %v1141 = vadd.f32 %v1126, %v1139
        %1142 = vst.msk [vmem:[%s294] sm:$0x3] %vm909, %v1141
        %v1143 = vrot.slane %v803, 2
        %v1144 = vrot.slane %v875, 2
        %1147 = vrot.lane.b32.xlu0 %v1143, 64
        %v1148 = vpop.permute.xlu0 %1147
        %1149 = vrot.lane.b32.xlu0 %v1144, 64
        %v1150 = vpop.permute.xlu0 %1149
        %vm1151 = vcmp.lt.s32.totalorder %v886, 64
        %v1152 = vsel %vm1151, %v1148, %v1150
        %v1153 = vsel %vm1151, %v1150, %v1148
        %v1154 = vld [vmem:[%s294] sm:$0x3]
        %s1155 = scalar_lea.vmem [#allocation8], 18
        %v1156 = vld [vmem:[%s1155] ss:$8 sm:$0x3]
        %v1158 = vperm.slane %v1156, 0
        %v1159 = vperm.slane %v1156, 1
        %v1162 = vmul.f32 %v1152, %v1158
        %v1163 = vmul.f32 %v1153, %v1159
        %v1166 = vrot.slane %v1163, 7
        %v1167 = vsel %vm902, %v1162, %v1166
        %v1169 = vadd.f32 %v1154, %v1167
        %1170 = vst.msk [vmem:[%s294] sm:$0x3] %vm909, %v1169
        %v1171 = vrot.slane %v803, 3
        %v1172 = vrot.slane %v875, 3
        %1175 = vrot.lane.b32.xlu0 %v1171, 52
        %v1176 = vpop.permute.xlu0 %1175
        %1177 = vrot.lane.b32.xlu0 %v1172, 52
        %v1178 = vpop.permute.xlu0 %1177
        %vm1179 = vcmp.lt.s32.totalorder %v886, 52
        %v1180 = vsel %vm1179, %v1176, %v1178
        %v1181 = vsel %vm1179, %v1178, %v1176
        %v1182 = vld [vmem:[%s294] sm:$0x3]
        %s1183 = scalar_lea.vmem [#allocation8], 19
        %v1184 = vld [vmem:[%s1183] ss:$8 sm:$0x3]
        %v1186 = vperm.slane %v1184, 0
        %v1187 = vperm.slane %v1184, 1
        %v1190 = vmul.f32 %v1180, %v1186
        %v1191 = vmul.f32 %v1181, %v1187
        %v1194 = vrot.slane %v1191, 7
        %v1195 = vsel %vm902, %v1190, %v1194
        %v1197 = vadd.f32 %v1182, %v1195
        %1198 = vst.msk [vmem:[%s294] sm:$0x3] %vm909, %v1197
        %v1199 = vrot.slane %v803, 4
        %v1200 = vrot.slane %v875, 4
        %1203 = vrot.lane.b32.xlu0 %v1199, 12
        %v1204 = vpop.permute.xlu0 %1203
        %1205 = vrot.lane.b32.xlu0 %v1200, 12
        %v1206 = vpop.permute.xlu0 %1205
        %vm1207 = vcmp.lt.s32.totalorder %v886, 12
        %v1208 = vsel %vm1207, %v1204, %v1206
        %v1209 = vsel %vm1207, %v1206, %v1204
        %v1210 = vld [vmem:[%s294] sm:$0x3]
        %s1211 = scalar_lea.vmem [#allocation8], 20
        %v1212 = vld [vmem:[%s1211] ss:$8 sm:$0x3]
        %v1214 = vperm.slane %v1212, 0
        %v1215 = vperm.slane %v1212, 1
        %v1218 = vmul.f32 %v1209, %v1214
        %v1219 = vmul.f32 %v1208, %v1215
        %v1222 = vrot.slane %v1219, 7
        %v1223 = vsel %vm902, %v1218, %v1222
        %v1225 = vadd.f32 %v1210, %v1223
        %1226 = vst.msk [vmem:[%s294] sm:$0x3] %vm909, %v1225
        %v1227 = vld [vmem:[%s294] sm:$0x3]
        %1228 = vst [vmem:[#allocation1] sm:$0xff] %v803
        %1229 = vst [vmem:[#allocation1 + $0x9] sm:$0xff] %v875
        %s1230 = scalar_lea.vmem [#allocation1], 5
        %v1231 = vld [vmem:[%s1230] ss:$9 sm:$0xff]
        %v1233 = vadd.f32 %v1227, %v1231
        %1234 = vst.msk [vmem:[%s294] sm:$0x3] %vm909, %v1233
        %v1235 = vrot.slane %v803, 6
        %v1236 = vrot.slane %v875, 6
        %1239 = vrot.lane.b32.xlu0 %v1235, 116
        %v1240 = vpop.permute.xlu0 %1239
        %1241 = vrot.lane.b32.xlu0 %v1236, 116
        %v1242 = vpop.permute.xlu0 %1241
        %vm1243 = vcmp.lt.s32.totalorder %v886, 116
        %v1244 = vsel %vm1243, %v1240, %v1242
        %v1245 = vsel %vm1243, %v1242, %v1240
        %v1246 = vld [vmem:[%s294] sm:$0x3]
        %s1247 = scalar_lea.vmem [#allocation8], 22
        %v1248 = vld [vmem:[%s1247] ss:$8 sm:$0x3]
        %v1250 = vperm.slane %v1248, 0
        %v1251 = vperm.slane %v1248, 1
        %v1254 = vmul.f32 %v1244, %v1250
        %v1255 = vmul.f32 %v1245, %v1251
        %v1258 = vrot.slane %v1255, 7
        %v1259 = vsel %vm902, %v1254, %v1258
        %v1261 = vadd.f32 %v1246, %v1259
        %1262 = vst.msk [vmem:[%s294] sm:$0x3] %vm909, %v1261
        %v1263 = vrot.slane %v803, 7
        %v1264 = vrot.slane %v875, 7
        %1267 = vrot.lane.b32.xlu0 %v1263, 76
        %v1268 = vpop.permute.xlu0 %1267
        %1269 = vrot.lane.b32.xlu0 %v1264, 76
        %v1270 = vpop.permute.xlu0 %1269
        %v1271 = vsel %vm1123, %v1268, %v1270
        %v1272 = vsel %vm1123, %v1270, %v1268
        %v1273 = vld [vmem:[%s294] sm:$0x3]
        %s1274 = scalar_lea.vmem [#allocation8], 23
        %v1275 = vld [vmem:[%s1274] ss:$8 sm:$0x3]
        %v1277 = vperm.slane %v1275, 0
        %v1278 = vperm.slane %v1275, 1
        %v1281 = vmul.f32 %v1272, %v1277
        %v1282 = vmul.f32 %v1271, %v1278
        %v1285 = vrot.slane %v1282, 7
        %v1286 = vsel %vm902, %v1281, %v1285
        %v1288 = vadd.f32 %v1273, %v1286
        %1289 = vst.msk [vmem:[%s294] sm:$0x3] %vm909, %v1288
        %1290 = vrot.lane.b32.xlu0 %v806, 64
        %v1291 = vpop.permute.xlu0 %1290
        %1292 = vrot.lane.b32.xlu0 %v878, 64
        %v1293 = vpop.permute.xlu0 %1292
        %v1294 = vsel %vm1151, %v1291, %v1293
        %v1295 = vsel %vm1151, %v1293, %v1291
        %v1296 = vld [vmem:[%s294] sm:$0x3]
        %s1297 = scalar_lea.vmem [#allocation8], 32
        %v1298 = vld [vmem:[%s1297] ss:$8 sm:$0x3]
        %v1300 = vperm.slane %v1298, 0
        %v1301 = vperm.slane %v1298, 1
        %v1304 = vmul.f32 %v1295, %v1300
        %v1305 = vmul.f32 %v1294, %v1301
        %v1308 = vrot.slane %v1305, 7
        %v1309 = vsel %vm902, %v1304, %v1308
        %v1311 = vadd.f32 %v1296, %v1309
        %1312 = vst.msk [vmem:[%s294] sm:$0x3] %vm909, %v1311
        %v1315 = vrot.slane %v806, 1
        %v1316 = vrot.slane %v878, 1
        %1319 = vrot.lane.b32.xlu0 %v1315, 52
        %v1320 = vpop.permute.xlu0 %1319
        %1321 = vrot.lane.b32.xlu0 %v1316, 52
        %v1322 = vpop.permute.xlu0 %1321
        %v1323 = vsel %vm1179, %v1320, %v1322
        %v1324 = vsel %vm1179, %v1322, %v1320
        %v1325 = vld [vmem:[%s294] sm:$0x3]
        %s1326 = scalar_lea.vmem [#allocation8], 33
        %v1327 = vld [vmem:[%s1326] ss:$8 sm:$0x3]
        %v1329 = vperm.slane %v1327, 0
        %v1330 = vperm.slane %v1327, 1
        %v1333 = vmul.f32 %v1324, %v1329
        %v1334 = vmul.f32 %v1323, %v1330
        %v1337 = vrot.slane %v1334, 7
        %v1338 = vsel %vm902, %v1333, %v1337
        %v1340 = vadd.f32 %v1325, %v1338
        %1341 = vst.msk [vmem:[%s294] sm:$0x3] %vm909, %v1340
        %v1342 = vld [vmem:[%s294] sm:$0x3]
        %1343 = vst [vmem:[#allocation1] sm:$0xff] %v806
        %1344 = vst [vmem:[#allocation1 + $0x9] sm:$0xff] %v878
        %s1345 = scalar_lea.vmem [#allocation1], 2
        %v1346 = vld [vmem:[%s1345] ss:$9 sm:$0xff]
        %v1348 = vadd.f32 %v1342, %v1346
        %1349 = vst.msk [vmem:[%s294] sm:$0x3] %vm909, %v1348
        %v1350 = vld [vmem:[%s294] sm:$0x3]
        %1351 = vst [vmem:[#allocation1] sm:$0xff] %v806
        %1352 = vst [vmem:[#allocation1 + $0x9] sm:$0xff] %v878
        %s1353 = scalar_lea.vmem [#allocation1], 3
        %v1354 = vld [vmem:[%s1353] ss:$9 sm:$0xff]
        %v1356 = vadd.f32 %v1350, %v1354
        %1357 = vst.msk [vmem:[%s294] sm:$0x3] %vm909, %v1356
        %s1358 = sand.u32 %s142, 1
        %s1359 = scalar_lea.sflag [#allocation5], %s1358
        %s1360 = sand.u32 %s142, 1
        %s1361 = smul.addr %s1360, 2
        %s1362 = scalar_lea.vmem [#allocation9], %s1361
        // Predicated region
        $region53: #{tpu_custom_call.1} parent=35 // pred_check
          %p1363 = pneg %p152
        $region54: #{tpu_custom_call.1} parent=35 // pred_check_branch
          %1365 = sbr.rel (%p1363) target = $region56
        $region55: #{tpu_custom_call.1} parent=35 // pred_region
          %1367 = vsyncadd %s1359, 0
          %s1368 = smul.addr %s30, 2
          %s1369 = scalar_lea.hbm %s4, %s1368
          %s1371 = sshll.u32 %s1362, 4
          %s1372 = int_to_ptr.vmem [resolvable:$true] %s1371
          %s1373 = sshll.u32 %s1369, 4
          %s1374 = int_to_ptr.hbm [resolvable:$true] %s1373
          %1376 = dma.vmem_to_hbm [thread:$0]  %s1372, 32, %s1374, %s1359
        $region56: #{tpu_custom_call.1} parent=35 // pred_fallthru
          _
      $region36: #{tpu_custom_call.1} parent=5 // pred_fallthru
        _
      %p1377 = scmp.le.s32.totalorder 2, %s21
      // Predicated region
      $region57: #{tpu_custom_call.1} parent=5 // pred_check
        %p1378 = pneg %p1377
      $region58: #{tpu_custom_call.1} parent=5 // pred_check_branch
        %1380 = sbr.rel (%p1378) target = $region60
      $region59: #{tpu_custom_call.1} parent=5 // pred_region
        %s1381 = ssub.s32 %s21, 2
        // Predicated region
        $region61: #{tpu_custom_call.1} parent=59 // pred_check
          %p1382 = pneg %p158
        $region62: #{tpu_custom_call.1} parent=59 // pred_check_branch
          %1384 = sbr.rel (%p1382) target = $region64
        $region63: #{tpu_custom_call.1} parent=59 // pred_region
          %s1385 = sand.u32 %s143, 1
          %s1386 = scalar_lea.sflag [#allocation5], %s1385
          %s1387 = sand.u32 %s143, 1
          %s1388 = smul.addr %s1387, 2
          %s1389 = scalar_lea.vmem [#allocation9], %s1388
          %1391 = dma.done %s1386, 32
        $region64: #{tpu_custom_call.1} parent=59 // pred_fallthru
          _
      $region60: #{tpu_custom_call.1} parent=5 // pred_fallthru
        _
    $region6: #{tpu_custom_call.1} parent=1 // loop_footer
      %s25 = sadd.s32 1, %s21
    $region7: #{tpu_custom_call.1} parent=1 // loop_footer_branch
      %20 = sbr.rel target = $region3
    $region8: #{tpu_custom_call.1} parent=1 // loop_exit
      _
    %1392 = vsyncpa [#allocation4], 1
    %s1393 = scalar_lea.sflag [#allocation4], 1
    %1394 = vsyncpa %s1393, 1
    %1395 = vsyncpa [#allocation7], 1
    %s1396 = scalar_lea.sflag [#allocation7], 1
    %1397 = vsyncpa %s1396, 1
    %1398 = vsyncpa [#allocation5], 1
    %s1399 = scalar_lea.sflag [#allocation5], 1
    %1400 = vsyncpa %s1399, 1

</llo_original>
